<compile_context>
chip_gen: v5e
topology: v5e:2x2
jax: 0.10.0
libtpu: 0.0.40
codegen_flags: <defaults>
</compile_context>

<pallas_src>
import functools

import jax
import jax.numpy as jnp
from jax.experimental import pallas as pl
from jax.experimental.pallas import tpu as pltpu

LANE = 128


def _round_up(v, m):
    return (v + m - 1) // m * m


def gated_graph_conv_kernel(h0_ref, a_ref, wg_ref, bg_ref, out_ref, *,
                            num_layers, hp):
    """Single-grid-point kernel; all refs are whole-array VMEM blocks.

    h0_ref : [N, Hp]        f32   zero-padded initial node state
    a_ref  : [N, N]         bf16  dense weighted adjacency (dst x src)
    wg_ref : [L, 2Hp, 4Hp]  bf16  fused per-layer gate weights
                                  rows  [0:Hp]   -> aggregated-message input (ah)
                                  rows  [Hp:2Hp] -> hidden-state input (h)
                                  cols  [0:Hp]=r, [Hp:2Hp]=z, [2Hp:3Hp]=i_n, [3Hp:4Hp]=h_n
    bg_ref : [1, 4Hp]       f32   gate biases (r/z pre-folded, n biases kept split)
    out_ref: [N, Hp]        f32   lane-dense output
    """
    h = h0_ref[...]                       # [N, Hp] f32 running hidden state
    a_bf = a_ref[...]                     # [N, N]  bf16
    bg = bg_ref[...]                      # [1, 4Hp] f32

    for l in range(num_layers):           # static unroll
        h_bf = h.astype(jnp.bfloat16)
        # aggregation; per-layer weight W[l] is folded into the gate matmul
        # via reassociation: (A @ (h @ W[l])) @ Wih^T == (A @ h) @ (W[l] @ Wih^T)
        ah = jnp.dot(a_bf, h_bf, preferred_element_type=jnp.float32)     # [N, Hp] f32
        # one MXU op for all gate pre-activations
        lhs = jnp.concatenate([ah.astype(jnp.bfloat16), h_bf], axis=1)   # [N, 2Hp] bf16
        gates = jnp.dot(lhs, wg_ref[l],
                        preferred_element_type=jnp.float32) + bg         # [N, 4Hp] f32
        # GRU epilogue in f32 (lane-aligned slices: hp is a multiple of 128)
        r = jax.nn.sigmoid(gates[:, 0:hp])
        z = jax.nn.sigmoid(gates[:, hp:2 * hp])
        n = jnp.tanh(gates[:, 2 * hp:3 * hp] + r * gates[:, 3 * hp:4 * hp])
        h = (1.0 - z) * n + z * h

    out_ref[...] = h


def gated_graph_conv(x, edge_index, edge_attr, params, *, out_channels, num_layers):
    """Wrapper: builds dense adjacency, padded state, fused gate weights; runs kernel."""
    N, C = x.shape
    H = out_channels
    assert C <= H, "GatedGraphConv requires in_channels <= out_channels"
    Hp = _round_up(max(H, LANE), LANE)    # lane-dense hidden dim

    f32 = jnp.float32

    # glue: zero-padded initial node state [N, Hp]
    h0 = jnp.zeros((N, Hp), f32).at[:, :C].set(x.astype(f32))

    # glue: dense weighted adjacency A[dst, src] (duplicate edges accumulate)
    src, dst = edge_index[0], edge_index[1]
    A = jnp.zeros((N, N), f32).at[dst, src].add(edge_attr.astype(f32))
    A = A.astype(jnp.bfloat16)

    # fused / lane-padded gate weights
    W = params["weight"].astype(f32)              # [L, H, H]
    wih_t = params["weight_ih"].T.astype(f32)     # [H, 3H]  cols = [r | z | n]
    whh_t = params["weight_hh"].T.astype(f32)     # [H, 3H]
    bih = params["bias_ih"].astype(f32)           # [3H]
    bhh = params["bias_hh"].astype(f32)           # [3H]

    wfused = jnp.einsum("lij,jk->lik", W, wih_t)  # [L, H, 3H] = W[l] @ Wih^T

    Wg = jnp.zeros((num_layers, 2 * Hp, 4 * Hp), f32)
    Wg = Wg.at[:, 0:H, 0:H].set(wfused[:, :, 0:H])                           # r  (input)
    Wg = Wg.at[:, 0:H, Hp:Hp + H].set(wfused[:, :, H:2 * H])                 # z  (input)
    Wg = Wg.at[:, 0:H, 2 * Hp:2 * Hp + H].set(wfused[:, :, 2 * H:3 * H])     # i_n
    Wg = Wg.at[:, Hp:Hp + H, 0:H].set(whh_t[:, 0:H])                         # r  (hidden)
    Wg = Wg.at[:, Hp:Hp + H, Hp:Hp + H].set(whh_t[:, H:2 * H])               # z  (hidden)
    Wg = Wg.at[:, Hp:Hp + H, 3 * Hp:3 * Hp + H].set(whh_t[:, 2 * H:3 * H])   # h_n
    Wg = Wg.astype(jnp.bfloat16)

    # biases: r/z pre-folded; n biases kept separate (b_hn sits inside r*(...))
    bg = jnp.zeros((1, 4 * Hp), f32)
    bg = bg.at[0, 0:H].set(bih[0:H] + bhh[0:H])
    bg = bg.at[0, Hp:Hp + H].set(bih[H:2 * H] + bhh[H:2 * H])
    bg = bg.at[0, 2 * Hp:2 * Hp + H].set(bih[2 * H:3 * H])
    bg = bg.at[0, 3 * Hp:3 * Hp + H].set(bhh[2 * H:3 * H])

    kernel = functools.partial(gated_graph_conv_kernel,
                               num_layers=num_layers, hp=Hp)

    vmem = pl.BlockSpec(memory_space=pltpu.MemorySpace.VMEM)
    out_padded = pl.pallas_call(
        kernel,
        out_shape=jax.ShapeDtypeStruct((N, Hp), f32),
        in_specs=[vmem] * 4,
        out_specs=vmem,
    )(h0, A, Wg, bg)

    # TODO(synk): for large/sparse graphs replace the dense NxN adjacency with a
    # CSR-style blocked aggregation (PrefetchScalarGridSpec + manual DMA gather),
    # tile dst nodes over a "parallel" grid axis (2 TCs on v7x), and budget the
    # A tile for v7x's 64 MiB VMEM via vmem_limit_bytes.
    return out_padded[:, :H]


def gated_graph_conv_ref(x, edge_index, edge_attr, params, *, out_channels, num_layers):
    """Pure-JAX f32 reference (original, unfused formulation)."""
    N, C = x.shape
    H = out_channels
    h = jnp.pad(x.astype(jnp.float32), ((0, 0), (0, H - C)))
    src, dst = edge_index[0], edge_index[1]
    wih, whh = params["weight_ih"], params["weight_hh"]
    bih, bhh = params["bias_ih"], params["bias_hh"]
    for l in range(num_layers):
        m = h @ params["weight"][l]
        msgs = m[src] * edge_attr[:, None]
        agg = jnp.zeros((N, H), jnp.float32).at[dst].add(msgs)
        gi = agg @ wih.T + bih
        gh = h @ whh.T + bhh
        i_r, i_z, i_n = gi[:, :H], gi[:, H:2 * H], gi[:, 2 * H:]
        h_r, h_z, h_n = gh[:, :H], gh[:, H:2 * H], gh[:, 2 * H:]
        r = jax.nn.sigmoid(i_r + h_r)
        z = jax.nn.sigmoid(i_z + h_z)
        n = jnp.tanh(i_n + r * h_n)
        h = (1.0 - z) * n + z * h
    return h


if __name__ == "__main__":
    N = 16            # nodes
    IN_CHANNELS = 16  # input feature dim (<= out_channels, zero-padded)
    H = 32            # out_channels
    L = 3             # num_layers
    E = 48            # edges

    key = jax.random.PRNGKey(0)
    kx, ke, kw, kwa, kwb, kwc, kba, kbb = jax.random.split(key, 8)

    x = jax.random.normal(kx, (N, IN_CHANNELS), jnp.float32)
    edge_index = jax.random.randint(ke, (2, E), 0, N, jnp.int32)
    edge_attr = jax.random.uniform(kw, (E,), jnp.float32)

    # Deterministic parameter init (shapes match GatedGraphConv + nn.GRUCell).
    params = {
        "weight":    0.1 * jax.random.normal(kwa, (L, H, H), jnp.float32),
        "weight_ih": 0.1 * jax.random.normal(kwb, (3 * H, H), jnp.float32),
        "weight_hh": 0.1 * jax.random.normal(kwc, (3 * H, H), jnp.float32),
        "bias_ih":   0.1 * jax.random.normal(kba, (3 * H,), jnp.float32),
        "bias_hh":   0.1 * jax.random.normal(kbb, (3 * H,), jnp.float32),
    }

    out = gated_graph_conv(x, edge_index, edge_attr, params,
                           out_channels=H, num_layers=L)
    out = jax.block_until_ready(out)

    ref = gated_graph_conv_ref(x, edge_index, edge_attr, params,
                               out_channels=H, num_layers=L)
    assert out.shape == (N, H)
    # bf16 MXU operands (f32 accumulation) vs an all-f32 reference: tolerance
    # loosened accordingly; genuine semantic bugs produce O(0.1-1) errors.
    assert jnp.allclose(out, ref, atol=5e-2, rtol=5e-2), (
        "mismatch vs JAX reference, max abs err = "
        f"{float(jnp.max(jnp.abs(out - ref)))}")

    print("KERNEL_OK")
</pallas_src>

<mosaic_0001>
module attributes {stable_mosaic.version = 11 : i64} {
  func.func @gated_graph_conv_kernel(%arg0: memref<16x128xf32, #tpu.memory_space<vmem>>, %arg1: memref<16x16xbf16, #tpu.memory_space<vmem>>, %arg2: memref<3x256x512xbf16, #tpu.memory_space<vmem>>, %arg3: memref<1x512xf32, #tpu.memory_space<vmem>>, %arg4: memref<16x128xf32, #tpu.memory_space<vmem>>) attributes {dimension_semantics = [], scalar_prefetch = 0 : i64, scratch_operands = 0 : i64, tpu.core_type = #tpu.core_type<tc>} {
    %c0 = arith.constant 0 : index
    %c0_0 = arith.constant 0 : index
    %0 = vector.load %arg0[%c0, %c0_0] : memref<16x128xf32, #tpu.memory_space<vmem>>, vector<16x128xf32>
    %c0_1 = arith.constant 0 : index
    %c0_2 = arith.constant 0 : index
    %1 = vector.load %arg1[%c0_1, %c0_2] : memref<16x16xbf16, #tpu.memory_space<vmem>>, vector<16x16xbf16>
    %c0_3 = arith.constant 0 : index
    %c0_4 = arith.constant 0 : index
    %2 = vector.load %arg3[%c0_3, %c0_4] : memref<1x512xf32, #tpu.memory_space<vmem>>, vector<1x512xf32>
    %3 = arith.truncf %0 : vector<16x128xf32> to vector<16x128xbf16>
    %cst = arith.constant dense<0.000000e+00> : vector<16x128xf32>
    %4 = tpu.matmul %1, %3, %cst {dimension_numbers = #tpu.dot_dimension_numbers<[1], [0], [0], [1], [0, 0, 1, 1], [], []>} : vector<16x16xbf16>, vector<16x128xbf16>, vector<16x128xf32> -> vector<16x128xf32>
    %5 = arith.truncf %4 : vector<16x128xf32> to vector<16x128xbf16>
    %6 = tpu.concatenate %5, %3 in 1 : vector<16x128xbf16>, vector<16x128xbf16> -> vector<16x256xbf16>
    %c0_5 = arith.constant 0 : index
    %c0_6 = arith.constant 0 : index
    %c0_7 = arith.constant 0 : index
    %7 = vector.load %arg2[%c0_5, %c0_6, %c0_7] : memref<3x256x512xbf16, #tpu.memory_space<vmem>>, vector<1x256x512xbf16>
    %8 = vector.shape_cast %7 : vector<1x256x512xbf16> to vector<256x512xbf16>
    %cst_8 = arith.constant dense<0.000000e+00> : vector<16x512xf32>
    %9 = tpu.matmul %6, %8, %cst_8 {dimension_numbers = #tpu.dot_dimension_numbers<[1], [0], [0], [1], [0, 0, 1, 1], [], []>} : vector<16x256xbf16>, vector<256x512xbf16>, vector<16x512xf32> -> vector<16x512xf32>
    %10 = vector.broadcast %2 : vector<1x512xf32> to vector<16x512xf32>
    %11 = arith.addf %9, %10 : vector<16x512xf32>
    %12 = vector.extract_strided_slice %11 {offsets = [0, 0], sizes = [16, 128], strides = [1, 1]} : vector<16x512xf32> to vector<16x128xf32>
    %13 = arith.negf %12 : vector<16x128xf32>
    %14 = math.exp %13 : vector<16x128xf32>
    %cst_9 = arith.constant 1.000000e+00 : f32
    %15 = vector.broadcast %cst_9 : f32 to vector<16x128xf32>
    %16 = arith.addf %15, %14 : vector<16x128xf32>
    %17 = arith.divf %15, %16 : vector<16x128xf32>
    %18 = vector.extract_strided_slice %11 {offsets = [0, 128], sizes = [16, 128], strides = [1, 1]} : vector<16x512xf32> to vector<16x128xf32>
    %19 = arith.negf %18 : vector<16x128xf32>
    %20 = math.exp %19 : vector<16x128xf32>
    %cst_10 = arith.constant 1.000000e+00 : f32
    %21 = vector.broadcast %cst_10 : f32 to vector<16x128xf32>
    %22 = arith.addf %21, %20 : vector<16x128xf32>
    %23 = arith.divf %21, %22 : vector<16x128xf32>
    %24 = vector.extract_strided_slice %11 {offsets = [0, 256], sizes = [16, 128], strides = [1, 1]} : vector<16x512xf32> to vector<16x128xf32>
    %25 = vector.extract_strided_slice %11 {offsets = [0, 384], sizes = [16, 128], strides = [1, 1]} : vector<16x512xf32> to vector<16x128xf32>
    %26 = arith.mulf %17, %25 : vector<16x128xf32>
    %27 = arith.addf %24, %26 : vector<16x128xf32>
    %28 = math.tanh %27 : vector<16x128xf32>
    %cst_11 = arith.constant 1.000000e+00 : f32
    %29 = vector.broadcast %cst_11 : f32 to vector<16x128xf32>
    %30 = arith.subf %29, %23 : vector<16x128xf32>
    %31 = arith.mulf %30, %28 : vector<16x128xf32>
    %32 = arith.mulf %23, %0 : vector<16x128xf32>
    %33 = arith.addf %31, %32 : vector<16x128xf32>
    %34 = arith.truncf %33 : vector<16x128xf32> to vector<16x128xbf16>
    %cst_12 = arith.constant dense<0.000000e+00> : vector<16x128xf32>
    %35 = tpu.matmul %1, %34, %cst_12 {dimension_numbers = #tpu.dot_dimension_numbers<[1], [0], [0], [1], [0, 0, 1, 1], [], []>} : vector<16x16xbf16>, vector<16x128xbf16>, vector<16x128xf32> -> vector<16x128xf32>
    %36 = arith.truncf %35 : vector<16x128xf32> to vector<16x128xbf16>
    %37 = tpu.concatenate %36, %34 in 1 : vector<16x128xbf16>, vector<16x128xbf16> -> vector<16x256xbf16>
    %c1 = arith.constant 1 : index
    %c0_13 = arith.constant 0 : index
    %c0_14 = arith.constant 0 : index
    %38 = vector.load %arg2[%c1, %c0_13, %c0_14] : memref<3x256x512xbf16, #tpu.memory_space<vmem>>, vector<1x256x512xbf16>
    %39 = vector.shape_cast %38 : vector<1x256x512xbf16> to vector<256x512xbf16>
    %cst_15 = arith.constant dense<0.000000e+00> : vector<16x512xf32>
    %40 = tpu.matmul %37, %39, %cst_15 {dimension_numbers = #tpu.dot_dimension_numbers<[1], [0], [0], [1], [0, 0, 1, 1], [], []>} : vector<16x256xbf16>, vector<256x512xbf16>, vector<16x512xf32> -> vector<16x512xf32>
    %41 = vector.broadcast %2 : vector<1x512xf32> to vector<16x512xf32>
    %42 = arith.addf %40, %41 : vector<16x512xf32>
    %43 = vector.extract_strided_slice %42 {offsets = [0, 0], sizes = [16, 128], strides = [1, 1]} : vector<16x512xf32> to vector<16x128xf32>
    %44 = arith.negf %43 : vector<16x128xf32>
    %45 = math.exp %44 : vector<16x128xf32>
    %cst_16 = arith.constant 1.000000e+00 : f32
    %46 = vector.broadcast %cst_16 : f32 to vector<16x128xf32>
    %47 = arith.addf %46, %45 : vector<16x128xf32>
    %48 = arith.divf %46, %47 : vector<16x128xf32>
    %49 = vector.extract_strided_slice %42 {offsets = [0, 128], sizes = [16, 128], strides = [1, 1]} : vector<16x512xf32> to vector<16x128xf32>
    %50 = arith.negf %49 : vector<16x128xf32>
    %51 = math.exp %50 : vector<16x128xf32>
    %cst_17 = arith.constant 1.000000e+00 : f32
    %52 = vector.broadcast %cst_17 : f32 to vector<16x128xf32>
    %53 = arith.addf %52, %51 : vector<16x128xf32>
    %54 = arith.divf %52, %53 : vector<16x128xf32>
    %55 = vector.extract_strided_slice %42 {offsets = [0, 256], sizes = [16, 128], strides = [1, 1]} : vector<16x512xf32> to vector<16x128xf32>
    %56 = vector.extract_strided_slice %42 {offsets = [0, 384], sizes = [16, 128], strides = [1, 1]} : vector<16x512xf32> to vector<16x128xf32>
    %57 = arith.mulf %48, %56 : vector<16x128xf32>
    %58 = arith.addf %55, %57 : vector<16x128xf32>
    %59 = math.tanh %58 : vector<16x128xf32>
    %cst_18 = arith.constant 1.000000e+00 : f32
    %60 = vector.broadcast %cst_18 : f32 to vector<16x128xf32>
    %61 = arith.subf %60, %54 : vector<16x128xf32>
    %62 = arith.mulf %61, %59 : vector<16x128xf32>
    %63 = arith.mulf %54, %33 : vector<16x128xf32>
    %64 = arith.addf %62, %63 : vector<16x128xf32>
    %65 = arith.truncf %64 : vector<16x128xf32> to vector<16x128xbf16>
    %cst_19 = arith.constant dense<0.000000e+00> : vector<16x128xf32>
    %66 = tpu.matmul %1, %65, %cst_19 {dimension_numbers = #tpu.dot_dimension_numbers<[1], [0], [0], [1], [0, 0, 1, 1], [], []>} : vector<16x16xbf16>, vector<16x128xbf16>, vector<16x128xf32> -> vector<16x128xf32>
    %67 = arith.truncf %66 : vector<16x128xf32> to vector<16x128xbf16>
    %68 = tpu.concatenate %67, %65 in 1 : vector<16x128xbf16>, vector<16x128xbf16> -> vector<16x256xbf16>
    %c2 = arith.constant 2 : index
    %c0_20 = arith.constant 0 : index
    %c0_21 = arith.constant 0 : index
    %69 = vector.load %arg2[%c2, %c0_20, %c0_21] : memref<3x256x512xbf16, #tpu.memory_space<vmem>>, vector<1x256x512xbf16>
    %70 = vector.shape_cast %69 : vector<1x256x512xbf16> to vector<256x512xbf16>
    %cst_22 = arith.constant dense<0.000000e+00> : vector<16x512xf32>
    %71 = tpu.matmul %68, %70, %cst_22 {dimension_numbers = #tpu.dot_dimension_numbers<[1], [0], [0], [1], [0, 0, 1, 1], [], []>} : vector<16x256xbf16>, vector<256x512xbf16>, vector<16x512xf32> -> vector<16x512xf32>
    %72 = vector.broadcast %2 : vector<1x512xf32> to vector<16x512xf32>
    %73 = arith.addf %71, %72 : vector<16x512xf32>
    %74 = vector.extract_strided_slice %73 {offsets = [0, 0], sizes = [16, 128], strides = [1, 1]} : vector<16x512xf32> to vector<16x128xf32>
    %75 = arith.negf %74 : vector<16x128xf32>
    %76 = math.exp %75 : vector<16x128xf32>
    %cst_23 = arith.constant 1.000000e+00 : f32
    %77 = vector.broadcast %cst_23 : f32 to vector<16x128xf32>
    %78 = arith.addf %77, %76 : vector<16x128xf32>
    %79 = arith.divf %77, %78 : vector<16x128xf32>
    %80 = vector.extract_strided_slice %73 {offsets = [0, 128], sizes = [16, 128], strides = [1, 1]} : vector<16x512xf32> to vector<16x128xf32>
    %81 = arith.negf %80 : vector<16x128xf32>
    %82 = math.exp %81 : vector<16x128xf32>
    %cst_24 = arith.constant 1.000000e+00 : f32
    %83 = vector.broadcast %cst_24 : f32 to vector<16x128xf32>
    %84 = arith.addf %83, %82 : vector<16x128xf32>
    %85 = arith.divf %83, %84 : vector<16x128xf32>
    %86 = vector.extract_strided_slice %73 {offsets = [0, 256], sizes = [16, 128], strides = [1, 1]} : vector<16x512xf32> to vector<16x128xf32>
    %87 = vector.extract_strided_slice %73 {offsets = [0, 384], sizes = [16, 128], strides = [1, 1]} : vector<16x512xf32> to vector<16x128xf32>
    %88 = arith.mulf %79, %87 : vector<16x128xf32>
    %89 = arith.addf %86, %88 : vector<16x128xf32>
    %90 = math.tanh %89 : vector<16x128xf32>
    %cst_25 = arith.constant 1.000000e+00 : f32
    %91 = vector.broadcast %cst_25 : f32 to vector<16x128xf32>
    %92 = arith.subf %91, %85 : vector<16x128xf32>
    %93 = arith.mulf %92, %90 : vector<16x128xf32>
    %94 = arith.mulf %85, %64 : vector<16x128xf32>
    %95 = arith.addf %93, %94 : vector<16x128xf32>
    %c0_26 = arith.constant 0 : index
    %c0_27 = arith.constant 0 : index
    %96 = vector.load %arg4[%c0_26, %c0_27] : memref<16x128xf32, #tpu.memory_space<vmem>>, vector<16x128xf32>
    tpu.vector_store %arg4[%c0_26, %c0_27], %95 {strides = array<i32>} : memref<16x128xf32, #tpu.memory_space<vmem>>, vector<16x128xf32>,
    return
  }
}

</mosaic_0001>

<llo_original>
// kernel: tpu_custom_call.1
$region0: #{tpu_custom_call.1}
  #allocation0 [shape = 'u32[]', space=smem, size = 0x4, offset = 0x4, fixed_abs, tag = 'smem constant byte address 0x4 - core index']
  #allocation1 [shape = 'u32[72,128]{1,0:T(1,128)}', space=vmem, size = 0x9000, scoped, tag = 'internal scratch']
  %s0 = inlined_call_operand.hbm [shape: f32[16,128], index: 0, kind: input, shape index: {}]
  %s1 = inlined_call_operand.hbm [shape: bf16[16,16], index: 1, kind: input, shape index: {}]
  %s2 = inlined_call_operand.hbm [shape: bf16[3,256,512], index: 2, kind: input, shape index: {}]
  %s3 = inlined_call_operand.hbm [shape: f32[1,512], index: 3, kind: input, shape index: {}]
  %s4 = inlined_call_operand.hbm [shape: f32[16,128], index: 4, kind: output, shape index: {}]
  %s5 = sld [smem:[#allocation0]]
  $region42: #{tpu_custom_call.1} parent=0
    _
  %s7 = ssub.s32 1, %s5
  %s8 = scalar_select 0, %s7, %s5
  $region1: #{tpu_custom_call.1} parent=0
    #allocation2 [shape = 'u8[8192]{0}', space=vmem, size = 0x2000, scoped, tag = 'input window, operand 0, single buffered']
    #allocation3 [shape = 's32[1]{0}', space=sflag, size = 0x4, scoped, tag = 'scoped memory for tpu_custom_call.1']
    #allocation4 [shape = 's32[1]{0}', space=sflag, size = 0x4, scoped, tag = 'scoped memory for tpu_custom_call.1']
    #allocation5 [shape = 'u8[4096]{0}', space=vmem, size = 0x1000, scoped, tag = 'input window, operand 1, single buffered']
    #allocation6 [shape = 's32[1]{0}', space=sflag, size = 0x4, scoped, tag = 'scoped memory for tpu_custom_call.1']
    #allocation7 [shape = 'u8[786432]{0}', space=vmem, size = 0xc0000, scoped, tag = 'input window, operand 2, single buffered']
    #allocation8 [shape = 'u8[2048]{0}', space=vmem, size = 0x800, scoped, tag = 'input window, operand 3, single buffered']
    #allocation9 [shape = 's32[1]{0}', space=sflag, size = 0x4, scoped, tag = 'scoped memory for tpu_custom_call.1']
    #allocation10 [shape = 'u8[8192]{0}', space=vmem, size = 0x2000, scoped, tag = 'output window, operand 0, single buffered']
    %9 = vsyncpa [#allocation3], 0
    %10 = vsyncpa [#allocation6], 0
    %11 = vsyncpa [#allocation9], 0
    %12 = vsyncpa [#allocation4], 0
    // Predicated region
    $region2: #{tpu_custom_call.1} parent=1 // pred_check
      _
    $region3: #{tpu_custom_call.1} parent=1 // pred_check_branch
      %14 = sbr.rel (0) target = $region5
    $region4: #{tpu_custom_call.1} parent=1 // pred_region
      %16 = vsyncadd [#allocation3], 0
      %s17 = sshll.u32 %s0, 4
      %s18 = int_to_ptr.hbm [resolvable:$true] %s17
      %s19 = sshll.u32 [#allocation2], 4
      %s20 = int_to_ptr.vmem [resolvable:$true] %s19
      %25 = dma.hbm_to_vmem [thread:$0]  %s18, 256, %s20, [#allocation3], 128, 128, 8
    $region5: #{tpu_custom_call.1} parent=1 // pred_fallthru
      _
    // Predicated region
    $region6: #{tpu_custom_call.1} parent=1 // pred_check
      _
    $region7: #{tpu_custom_call.1} parent=1 // pred_check_branch
      %27 = sbr.rel (0) target = $region9
    $region8: #{tpu_custom_call.1} parent=1 // pred_region
      %29 = vsyncadd [#allocation6], 0
      %s30 = sshll.u32 %s1, 4
      %s31 = int_to_ptr.hbm [resolvable:$true] %s30
      %s32 = sshll.u32 [#allocation5], 4
      %s33 = int_to_ptr.vmem [resolvable:$true] %s32
      %38 = dma.hbm_to_vmem [thread:$0]  %s31, 128, %s33, [#allocation6], 64, 64, 4
    $region9: #{tpu_custom_call.1} parent=1 // pred_fallthru
      _
    // Predicated region
    $region10: #{tpu_custom_call.1} parent=1 // pred_check
      _
    $region11: #{tpu_custom_call.1} parent=1 // pred_check_branch
      %40 = sbr.rel (0) target = $region13
    $region12: #{tpu_custom_call.1} parent=1 // pred_region
      %42 = vsyncadd [#allocation6], 0
      %s43 = sshll.u32 %s2, 4
      %s44 = int_to_ptr.hbm [resolvable:$true] %s43
      %s45 = sshll.u32 [#allocation7], 4
      %s46 = int_to_ptr.vmem [resolvable:$true] %s45
      %51 = dma.hbm_to_vmem [thread:$0]  %s44, 24576, %s46, [#allocation6], 256, 256, 16
    $region13: #{tpu_custom_call.1} parent=1 // pred_fallthru
      _
    // Predicated region
    $region14: #{tpu_custom_call.1} parent=1 // pred_check
      _
    $region15: #{tpu_custom_call.1} parent=1 // pred_check_branch
      %53 = sbr.rel (0) target = $region17
    $region16: #{tpu_custom_call.1} parent=1 // pred_region
      %55 = vsyncadd [#allocation9], 0
      %s57 = sshll.u32 %s3, 4
      %s58 = int_to_ptr.hbm [resolvable:$true] %s57
      %s59 = sshll.u32 [#allocation8], 4
      %s60 = int_to_ptr.vmem [resolvable:$true] %s59
      %62 = dma.hbm_to_vmem [thread:$0]  %s58, 64, %s60, [#allocation9]
    $region17: #{tpu_custom_call.1} parent=1 // pred_fallthru
      _
    // Predicated region
    $region18: #{tpu_custom_call.1} parent=1 // pred_check
      _
    $region19: #{tpu_custom_call.1} parent=1 // pred_check_branch
      %64 = sbr.rel (0) target = $region21
    $region20: #{tpu_custom_call.1} parent=1 // pred_region
      %66 = dma.done [#allocation3], 256
    $region21: #{tpu_custom_call.1} parent=1 // pred_fallthru
      _
    // Predicated region
    $region22: #{tpu_custom_call.1} parent=1 // pred_check
      _
    $region23: #{tpu_custom_call.1} parent=1 // pred_check_branch
      %68 = sbr.rel (0) target = $region25
    $region24: #{tpu_custom_call.1} parent=1 // pred_region
      %70 = dma.done [#allocation6], 128
    $region25: #{tpu_custom_call.1} parent=1 // pred_fallthru
      _
    // Predicated region
    $region26: #{tpu_custom_call.1} parent=1 // pred_check
      _
    $region27: #{tpu_custom_call.1} parent=1 // pred_check_branch
      %72 = sbr.rel (0) target = $region29
    $region28: #{tpu_custom_call.1} parent=1 // pred_region
      %74 = dma.done [#allocation6], 24576
    $region29: #{tpu_custom_call.1} parent=1 // pred_fallthru
      _
    // Predicated region
    $region30: #{tpu_custom_call.1} parent=1 // pred_check
      _
    $region31: #{tpu_custom_call.1} parent=1 // pred_check_branch
      %76 = sbr.rel (0) target = $region33
    $region32: #{tpu_custom_call.1} parent=1 // pred_region
      %78 = dma.done [#allocation9], 64
    $region33: #{tpu_custom_call.1} parent=1 // pred_fallthru
      _
    %v80 = vld [vmem:[#allocation2] sm:$0xff]
    %v81 = vld [vmem:[#allocation2 + $0x8] sm:$0xff]
    %v82 = vld [vmem:[#allocation5] sm:$0xf]
    %v83 = vld [vmem:[#allocation5 + $0x4] sm:$0xf]
    %v84 = vld [vmem:[#allocation8] sm:$0xf]
    %v85 = vpack.c.bf16 %v80, %v80
    %v86 = vpack.c.bf16 %v81, %v81
    %v89 = vunpack.c.l.b16 %v82
    %v90 = vunpack.c.l.b16 %v83
    %v91 = vpack.c.b16 %v90, %v89
    %v94 = vunpack.c.l.b16 %v85
    %v95 = vunpack.c.l.b16 %v86
    %v96 = vpack.c.b16 %v95, %v94
    %vm98 = vcmask 130048
    %v100 = vsel %vm98, %v91, 0
    %102 = vmatpush.bf16.msra.mxu0 0
    %103 = vmatpush.bf16.msra.mxu0 0
    %104 = vmatpush.bf16.msra.mxu0 0
    %105 = vmatpush.bf16.msra.mxu0 0
    %106 = vmatpush.bf16.msra.mxu0 0
    %107 = vmatpush.bf16.msra.mxu0 0
    %108 = vmatpush.bf16.msra.mxu0 0
    %109 = vmatpush.bf16.msra.mxu0 %v96
    %110 = vmatmul.bf16.gmra.mxu0 %v100
    %v111 = vpop.f32.mrf.mxu0
    %v112 = vadd.f32 0.0, %v111
    %v113 = vpop.f32.mrf.mxu0
    %v114 = vadd.f32 0.0, %v113
    %115 = vdwg.mxu0
    %v116 = vpack.c.bf16 %v112, %v112
    %v117 = vpack.c.bf16 %v114, %v114
    %v120 = vunpack.c.l.b16 %v116
    %v121 = vunpack.c.l.b16 %v117
    %v122 = vpack.c.b16 %v121, %v120
    %v124 = vld [vmem:[#allocation7] sm:$0xff]
    %v125 = vld [vmem:[#allocation7 + $0x8] sm:$0xff]
    %v126 = vld [vmem:[#allocation7 + $0x10] sm:$0xff]
    %v127 = vld [vmem:[#allocation7 + $0x18] sm:$0xff]
    %v128 = vld [vmem:[#allocation7 + $0x20] sm:$0xff]
    %v129 = vld [vmem:[#allocation7 + $0x28] sm:$0xff]
    %v130 = vld [vmem:[#allocation7 + $0x30] sm:$0xff]
    %v131 = vld [vmem:[#allocation7 + $0x38] sm:$0xff]
    %v132 = vld [vmem:[#allocation7 + $0x40] sm:$0xff]
    %v133 = vld [vmem:[#allocation7 + $0x48] sm:$0xff]
    %v134 = vld [vmem:[#allocation7 + $0x50] sm:$0xff]
    %v135 = vld [vmem:[#allocation7 + $0x58] sm:$0xff]
    %v136 = vld [vmem:[#allocation7 + $0x60] sm:$0xff]
    %v137 = vld [vmem:[#allocation7 + $0x68] sm:$0xff]
    %v138 = vld [vmem:[#allocation7 + $0x70] sm:$0xff]
    %v139 = vld [vmem:[#allocation7 + $0x78] sm:$0xff]
    %v140 = vld [vmem:[#allocation7 + $0x80] sm:$0xff]
    %v141 = vld [vmem:[#allocation7 + $0x88] sm:$0xff]
    %v142 = vld [vmem:[#allocation7 + $0x90] sm:$0xff]
    %v143 = vld [vmem:[#allocation7 + $0x98] sm:$0xff]
    %v144 = vld [vmem:[#allocation7 + $0xa0] sm:$0xff]
    %v145 = vld [vmem:[#allocation7 + $0xa8] sm:$0xff]
    %v146 = vld [vmem:[#allocation7 + $0xb0] sm:$0xff]
    %v147 = vld [vmem:[#allocation7 + $0xb8] sm:$0xff]
    %v148 = vld [vmem:[#allocation7 + $0xc0] sm:$0xff]
    %v149 = vld [vmem:[#allocation7 + $0xc8] sm:$0xff]
    %v150 = vld [vmem:[#allocation7 + $0xd0] sm:$0xff]
    %v151 = vld [vmem:[#allocation7 + $0xd8] sm:$0xff]
    %v152 = vld [vmem:[#allocation7 + $0xe0] sm:$0xff]
    %v153 = vld [vmem:[#allocation7 + $0xe8] sm:$0xff]
    %v154 = vld [vmem:[#allocation7 + $0xf0] sm:$0xff]
    %v155 = vld [vmem:[#allocation7 + $0xf8] sm:$0xff]
    %v156 = vld [vmem:[#allocation7 + $0x100] sm:$0xff]
    %v157 = vld [vmem:[#allocation7 + $0x108] sm:$0xff]
    %v158 = vld [vmem:[#allocation7 + $0x110] sm:$0xff]
    %v159 = vld [vmem:[#allocation7 + $0x118] sm:$0xff]
    %v160 = vld [vmem:[#allocation7 + $0x120] sm:$0xff]
    %v161 = vld [vmem:[#allocation7 + $0x128] sm:$0xff]
    %v162 = vld [vmem:[#allocation7 + $0x130] sm:$0xff]
    %v163 = vld [vmem:[#allocation7 + $0x138] sm:$0xff]
    %v164 = vld [vmem:[#allocation7 + $0x140] sm:$0xff]
    %v165 = vld [vmem:[#allocation7 + $0x148] sm:$0xff]
    %v166 = vld [vmem:[#allocation7 + $0x150] sm:$0xff]
    %v167 = vld [vmem:[#allocation7 + $0x158] sm:$0xff]
    %v168 = vld [vmem:[#allocation7 + $0x160] sm:$0xff]
    %v169 = vld [vmem:[#allocation7 + $0x168] sm:$0xff]
    %v170 = vld [vmem:[#allocation7 + $0x170] sm:$0xff]
    %v171 = vld [vmem:[#allocation7 + $0x178] sm:$0xff]
    %v172 = vld [vmem:[#allocation7 + $0x180] sm:$0xff]
    %v173 = vld [vmem:[#allocation7 + $0x188] sm:$0xff]
    %v174 = vld [vmem:[#allocation7 + $0x190] sm:$0xff]
    %v175 = vld [vmem:[#allocation7 + $0x198] sm:$0xff]
    %v176 = vld [vmem:[#allocation7 + $0x1a0] sm:$0xff]
    %v177 = vld [vmem:[#allocation7 + $0x1a8] sm:$0xff]
    %v178 = vld [vmem:[#allocation7 + $0x1b0] sm:$0xff]
    %v179 = vld [vmem:[#allocation7 + $0x1b8] sm:$0xff]
    %v180 = vld [vmem:[#allocation7 + $0x1c0] sm:$0xff]
    %v181 = vld [vmem:[#allocation7 + $0x1c8] sm:$0xff]
    %v182 = vld [vmem:[#allocation7 + $0x1d0] sm:$0xff]
    %v183 = vld [vmem:[#allocation7 + $0x1d8] sm:$0xff]
    %v184 = vld [vmem:[#allocation7 + $0x1e0] sm:$0xff]
    %v185 = vld [vmem:[#allocation7 + $0x1e8] sm:$0xff]
    %v186 = vld [vmem:[#allocation7 + $0x1f0] sm:$0xff]
    %v187 = vld [vmem:[#allocation7 + $0x1f8] sm:$0xff]
    %v189 = vperm.slane %v84, 0
    %v190 = vperm.slane %v84, 1
    %v191 = vperm.slane %v84, 2
    %v192 = vperm.slane %v84, 3
    %v261 = vunpack.c.l.b16 %v124
    %v262 = vunpack.c.h.b16 %v124
    %v263 = vunpack.c.l.b16 %v125
    %v264 = vunpack.c.h.b16 %v125
    %v265 = vunpack.c.l.b16 %v126
    %v266 = vunpack.c.h.b16 %v126
    %v267 = vunpack.c.l.b16 %v127
    %v268 = vunpack.c.h.b16 %v127
    %v269 = vunpack.c.l.b16 %v128
    %v270 = vunpack.c.h.b16 %v128
    %v271 = vunpack.c.l.b16 %v129
    %v272 = vunpack.c.h.b16 %v129
    %v273 = vunpack.c.l.b16 %v130
    %v274 = vunpack.c.h.b16 %v130
    %v275 = vunpack.c.l.b16 %v131
    %v276 = vunpack.c.h.b16 %v131
    %v277 = vunpack.c.l.b16 %v132
    %v278 = vunpack.c.h.b16 %v132
    %v279 = vunpack.c.l.b16 %v133
    %v280 = vunpack.c.h.b16 %v133
    %v281 = vunpack.c.l.b16 %v134
    %v282 = vunpack.c.h.b16 %v134
    %v283 = vunpack.c.l.b16 %v135
    %v284 = vunpack.c.h.b16 %v135
    %v285 = vunpack.c.l.b16 %v136
    %v286 = vunpack.c.h.b16 %v136
    %v287 = vunpack.c.l.b16 %v137
    %v288 = vunpack.c.h.b16 %v137
    %v289 = vunpack.c.l.b16 %v138
    %v290 = vunpack.c.h.b16 %v138
    %v291 = vunpack.c.l.b16 %v139
    %v292 = vunpack.c.h.b16 %v139
    %v293 = vunpack.c.l.b16 %v140
    %v294 = vunpack.c.h.b16 %v140
    %v295 = vunpack.c.l.b16 %v141
    %v296 = vunpack.c.h.b16 %v141
    %v297 = vunpack.c.l.b16 %v142
    %v298 = vunpack.c.h.b16 %v142
    %v299 = vunpack.c.l.b16 %v143
    %v300 = vunpack.c.h.b16 %v143
    %v301 = vunpack.c.l.b16 %v144
    %v302 = vunpack.c.h.b16 %v144
    %v303 = vunpack.c.l.b16 %v145
    %v304 = vunpack.c.h.b16 %v145
    %v305 = vunpack.c.l.b16 %v146
    %v306 = vunpack.c.h.b16 %v146
    %v307 = vunpack.c.l.b16 %v147
    %v308 = vunpack.c.h.b16 %v147
    %v309 = vunpack.c.l.b16 %v148
    %v310 = vunpack.c.h.b16 %v148
    %v311 = vunpack.c.l.b16 %v149
    %v312 = vunpack.c.h.b16 %v149
    %v313 = vunpack.c.l.b16 %v150
    %v314 = vunpack.c.h.b16 %v150
    %v315 = vunpack.c.l.b16 %v151
    %v316 = vunpack.c.h.b16 %v151
    %v317 = vunpack.c.l.b16 %v152
    %v318 = vunpack.c.h.b16 %v152
    %v319 = vunpack.c.l.b16 %v153
    %v320 = vunpack.c.h.b16 %v153
    %v321 = vunpack.c.l.b16 %v154
    %v322 = vunpack.c.h.b16 %v154
    %v323 = vunpack.c.l.b16 %v155
    %v324 = vunpack.c.h.b16 %v155
    %v325 = vunpack.c.l.b16 %v156
    %v326 = vunpack.c.h.b16 %v156
    %v327 = vunpack.c.l.b16 %v157
    %v328 = vunpack.c.h.b16 %v157
    %v329 = vunpack.c.l.b16 %v158
    %v330 = vunpack.c.h.b16 %v158
    %v331 = vunpack.c.l.b16 %v159
    %v332 = vunpack.c.h.b16 %v159
    %v333 = vunpack.c.l.b16 %v160
    %v334 = vunpack.c.h.b16 %v160
    %v335 = vunpack.c.l.b16 %v161
    %v336 = vunpack.c.h.b16 %v161
    %v337 = vunpack.c.l.b16 %v162
    %v338 = vunpack.c.h.b16 %v162
    %v339 = vunpack.c.l.b16 %v163
    %v340 = vunpack.c.h.b16 %v163
    %v341 = vunpack.c.l.b16 %v164
    %v342 = vunpack.c.h.b16 %v164
    %v343 = vunpack.c.l.b16 %v165
    %v344 = vunpack.c.h.b16 %v165
    %v345 = vunpack.c.l.b16 %v166
    %v346 = vunpack.c.h.b16 %v166
    %v347 = vunpack.c.l.b16 %v167
    %v348 = vunpack.c.h.b16 %v167
    %v349 = vunpack.c.l.b16 %v168
    %v350 = vunpack.c.h.b16 %v168
    %v351 = vunpack.c.l.b16 %v169
    %v352 = vunpack.c.h.b16 %v169
    %v353 = vunpack.c.l.b16 %v170
    %v354 = vunpack.c.h.b16 %v170
    %v355 = vunpack.c.l.b16 %v171
    %v356 = vunpack.c.h.b16 %v171
    %v357 = vunpack.c.l.b16 %v172
    %v358 = vunpack.c.h.b16 %v172
    %v359 = vunpack.c.l.b16 %v173
    %v360 = vunpack.c.h.b16 %v173
    %v361 = vunpack.c.l.b16 %v174
    %v362 = vunpack.c.h.b16 %v174
    %v363 = vunpack.c.l.b16 %v175
    %v364 = vunpack.c.h.b16 %v175
    %v365 = vunpack.c.l.b16 %v176
    %v366 = vunpack.c.h.b16 %v176
    %v367 = vunpack.c.l.b16 %v177
    %v368 = vunpack.c.h.b16 %v177
    %v369 = vunpack.c.l.b16 %v178
    %v370 = vunpack.c.h.b16 %v178
    %v371 = vunpack.c.l.b16 %v179
    %v372 = vunpack.c.h.b16 %v179
    %v373 = vunpack.c.l.b16 %v180
    %v374 = vunpack.c.h.b16 %v180
    %v375 = vunpack.c.l.b16 %v181
    %v376 = vunpack.c.h.b16 %v181
    %v377 = vunpack.c.l.b16 %v182
    %v378 = vunpack.c.h.b16 %v182
    %v379 = vunpack.c.l.b16 %v183
    %v380 = vunpack.c.h.b16 %v183
    %v381 = vunpack.c.l.b16 %v184
    %v382 = vunpack.c.h.b16 %v184
    %v383 = vunpack.c.l.b16 %v185
    %v384 = vunpack.c.h.b16 %v185
    %v385 = vunpack.c.l.b16 %v186
    %v386 = vunpack.c.h.b16 %v186
    %v387 = vunpack.c.l.b16 %v187
    %v388 = vunpack.c.h.b16 %v187
    %v389 = vpack.c.b16 %v265, %v261
    %v390 = vpack.c.b16 %v266, %v262
    %v391 = vpack.c.b16 %v267, %v263
    %v392 = vpack.c.b16 %v268, %v264
    %v393 = vpack.c.b16 %v273, %v269
    %v394 = vpack.c.b16 %v274, %v270
    %v395 = vpack.c.b16 %v275, %v271
    %v396 = vpack.c.b16 %v276, %v272
    %v397 = vpack.c.b16 %v281, %v277
    %v398 = vpack.c.b16 %v282, %v278
    %v399 = vpack.c.b16 %v283, %v279
    %v400 = vpack.c.b16 %v284, %v280
    %v401 = vpack.c.b16 %v289, %v285
    %v402 = vpack.c.b16 %v290, %v286
    %v403 = vpack.c.b16 %v291, %v287
    %v404 = vpack.c.b16 %v292, %v288
    %v405 = vpack.c.b16 %v297, %v293
    %v406 = vpack.c.b16 %v298, %v294
    %v407 = vpack.c.b16 %v299, %v295
    %v408 = vpack.c.b16 %v300, %v296
    %v409 = vpack.c.b16 %v305, %v301
    %v410 = vpack.c.b16 %v306, %v302
    %v411 = vpack.c.b16 %v307, %v303
    %v412 = vpack.c.b16 %v308, %v304
    %v413 = vpack.c.b16 %v313, %v309
    %v414 = vpack.c.b16 %v314, %v310
    %v415 = vpack.c.b16 %v315, %v311
    %v416 = vpack.c.b16 %v316, %v312
    %v417 = vpack.c.b16 %v321, %v317
    %v418 = vpack.c.b16 %v322, %v318
    %v419 = vpack.c.b16 %v323, %v319
    %v420 = vpack.c.b16 %v324, %v320
    %v421 = vpack.c.b16 %v329, %v325
    %v422 = vpack.c.b16 %v330, %v326
    %v423 = vpack.c.b16 %v331, %v327
    %v424 = vpack.c.b16 %v332, %v328
    %v425 = vpack.c.b16 %v337, %v333
    %v426 = vpack.c.b16 %v338, %v334
    %v427 = vpack.c.b16 %v339, %v335
    %v428 = vpack.c.b16 %v340, %v336
    %v429 = vpack.c.b16 %v345, %v341
    %v430 = vpack.c.b16 %v346, %v342
    %v431 = vpack.c.b16 %v347, %v343
    %v432 = vpack.c.b16 %v348, %v344
    %v433 = vpack.c.b16 %v353, %v349
    %v434 = vpack.c.b16 %v354, %v350
    %v435 = vpack.c.b16 %v355, %v351
    %v436 = vpack.c.b16 %v356, %v352
    %v437 = vpack.c.b16 %v361, %v357
    %v438 = vpack.c.b16 %v362, %v358
    %v439 = vpack.c.b16 %v363, %v359
    %v440 = vpack.c.b16 %v364, %v360
    %v441 = vpack.c.b16 %v369, %v365
    %v442 = vpack.c.b16 %v370, %v366
    %v443 = vpack.c.b16 %v371, %v367
    %v444 = vpack.c.b16 %v372, %v368
    %v445 = vpack.c.b16 %v377, %v373
    %v446 = vpack.c.b16 %v378, %v374
    %v447 = vpack.c.b16 %v379, %v375
    %v448 = vpack.c.b16 %v380, %v376
    %v449 = vpack.c.b16 %v385, %v381
    %v450 = vpack.c.b16 %v386, %v382
    %v451 = vpack.c.b16 %v387, %v383
    %v452 = vpack.c.b16 %v388, %v384
    %517 = vmatpush.bf16.msra.mxu0 %v417
    %518 = vmatpush.bf16.msra.mxu0 %v413
    %519 = vmatpush.bf16.msra.mxu0 %v409
    %520 = vmatpush.bf16.msra.mxu0 %v405
    %521 = vmatpush.bf16.msra.mxu0 %v401
    %522 = vmatpush.bf16.msra.mxu0 %v397
    %523 = vmatpush.bf16.msra.mxu0 %v393
    %524 = vmatpush.bf16.msra.mxu0 %v389
    %525 = vmatmul.bf16.gmra.mxu0 %v122
    %v526 = vpop.f32.mrf.mxu0
    %v527 = vadd.f32 %v189, %v526
    %v528 = vpop.f32.mrf.mxu0
    %v529 = vadd.f32 %v189, %v528
    %530 = vdwg.mxu0
    %531 = vmatpush.bf16.msra.mxu0 %v449
    %532 = vmatpush.bf16.msra.mxu0 %v445
    %533 = vmatpush.bf16.msra.mxu0 %v441
    %534 = vmatpush.bf16.msra.mxu0 %v437
    %535 = vmatpush.bf16.msra.mxu0 %v433
    %536 = vmatpush.bf16.msra.mxu0 %v429
    %537 = vmatpush.bf16.msra.mxu0 %v425
    %538 = vmatpush.bf16.msra.mxu0 %v421
    %539 = vmatmul.bf16.gmra.mxu0 %v96
    %v540 = vpop.f32.mrf.mxu0
    %v541 = vadd.f32 %v527, %v540
    %v542 = vpop.f32.mrf.mxu0
    %v543 = vadd.f32 %v529, %v542
    %544 = vdwg.mxu0
    %545 = vmatpush.bf16.msra.mxu0 %v418
    %546 = vmatpush.bf16.msra.mxu0 %v414
    %547 = vmatpush.bf16.msra.mxu0 %v410
    %548 = vmatpush.bf16.msra.mxu0 %v406
    %549 = vmatpush.bf16.msra.mxu0 %v402
    %550 = vmatpush.bf16.msra.mxu0 %v398
    %551 = vmatpush.bf16.msra.mxu0 %v394
    %552 = vmatpush.bf16.msra.mxu0 %v390
    %553 = vmatmul.bf16.gmra.mxu0 %v122
    %v554 = vpop.f32.mrf.mxu0
    %v555 = vadd.f32 %v190, %v554
    %v556 = vpop.f32.mrf.mxu0
    %v557 = vadd.f32 %v190, %v556
    %558 = vdwg.mxu0
    %559 = vmatpush.bf16.msra.mxu0 %v450
    %560 = vmatpush.bf16.msra.mxu0 %v446
    %561 = vmatpush.bf16.msra.mxu0 %v442
    %562 = vmatpush.bf16.msra.mxu0 %v438
    %563 = vmatpush.bf16.msra.mxu0 %v434
    %564 = vmatpush.bf16.msra.mxu0 %v430
    %565 = vmatpush.bf16.msra.mxu0 %v426
    %566 = vmatpush.bf16.msra.mxu0 %v422
    %567 = vmatmul.bf16.gmra.mxu0 %v96
    %v568 = vpop.f32.mrf.mxu0
    %v569 = vadd.f32 %v555, %v568
    %v570 = vpop.f32.mrf.mxu0
    %v571 = vadd.f32 %v557, %v570
    %572 = vdwg.mxu0
    %573 = vmatpush.bf16.msra.mxu0 %v419
    %574 = vmatpush.bf16.msra.mxu0 %v415
    %575 = vmatpush.bf16.msra.mxu0 %v411
    %576 = vmatpush.bf16.msra.mxu0 %v407
    %577 = vmatpush.bf16.msra.mxu0 %v403
    %578 = vmatpush.bf16.msra.mxu0 %v399
    %579 = vmatpush.bf16.msra.mxu0 %v395
    %580 = vmatpush.bf16.msra.mxu0 %v391
    %581 = vmatmul.bf16.gmra.mxu0 %v122
    %v582 = vpop.f32.mrf.mxu0
    %v583 = vadd.f32 %v191, %v582
    %v584 = vpop.f32.mrf.mxu0
    %v585 = vadd.f32 %v191, %v584
    %586 = vdwg.mxu0
    %587 = vmatpush.bf16.msra.mxu0 %v451
    %588 = vmatpush.bf16.msra.mxu0 %v447
    %589 = vmatpush.bf16.msra.mxu0 %v443
    %590 = vmatpush.bf16.msra.mxu0 %v439
    %591 = vmatpush.bf16.msra.mxu0 %v435
    %592 = vmatpush.bf16.msra.mxu0 %v431
    %593 = vmatpush.bf16.msra.mxu0 %v427
    %594 = vmatpush.bf16.msra.mxu0 %v423
    %595 = vmatmul.bf16.gmra.mxu0 %v96
    %v596 = vpop.f32.mrf.mxu0
    %v597 = vadd.f32 %v583, %v596
    %v598 = vpop.f32.mrf.mxu0
    %v599 = vadd.f32 %v585, %v598
    %600 = vdwg.mxu0
    %601 = vmatpush.bf16.msra.mxu0 %v420
    %602 = vmatpush.bf16.msra.mxu0 %v416
    %603 = vmatpush.bf16.msra.mxu0 %v412
    %604 = vmatpush.bf16.msra.mxu0 %v408
    %605 = vmatpush.bf16.msra.mxu0 %v404
    %606 = vmatpush.bf16.msra.mxu0 %v400
    %607 = vmatpush.bf16.msra.mxu0 %v396
    %608 = vmatpush.bf16.msra.mxu0 %v392
    %609 = vmatmul.bf16.gmra.mxu0 %v122
    %v610 = vpop.f32.mrf.mxu0
    %v611 = vadd.f32 %v192, %v610
    %v612 = vpop.f32.mrf.mxu0
    %v613 = vadd.f32 %v192, %v612
    %614 = vdwg.mxu0
    %615 = vmatpush.bf16.msra.mxu0 %v452
    %616 = vmatpush.bf16.msra.mxu0 %v448
    %617 = vmatpush.bf16.msra.mxu0 %v444
    %618 = vmatpush.bf16.msra.mxu0 %v440
    %619 = vmatpush.bf16.msra.mxu0 %v436
    %620 = vmatpush.bf16.msra.mxu0 %v432
    %621 = vmatpush.bf16.msra.mxu0 %v428
    %622 = vmatpush.bf16.msra.mxu0 %v424
    %623 = vmatmul.bf16.gmra.mxu0 %v96
    %v624 = vpop.f32.mrf.mxu0
    %v625 = vadd.f32 %v611, %v624
    %v626 = vpop.f32.mrf.mxu0
    %v627 = vadd.f32 %v613, %v626
    %628 = vdwg.mxu0
    %v629 = vxor.u32 %v541, 2147483648
    %v630 = vxor.u32 %v543, 2147483648
    %v631 = vmul.f32 %v629, 1.442695
    %v632 = vpow.pop %v631
    %v633 = vmul.f32 %v630, 1.442695
    %v634 = vpow.pop %v633
    %v635 = vadd.f32 %v632, 1.0
    %v636 = vadd.f32 %v634, 1.0
    %v637 = vrcp.pop %v635
    %v638 = vmul.f32 %v635, %v637
    %v639 = vsub.f32 1.0, %v638
    %v640 = vmul.f32 %v637, %v639
    %v641 = vadd.f32 %v637, %v640
    %vm642 = vweird.f32 %v635
    %vm643 = vweird.f32 %v637
    %vm644 = vmor %vm642, %vm643
    %v645 = vsel %vm644, %v637, %v641
    %v646 = vand.u32 2147483647, %v635
    %vm647 = vcmp.eq.f32.partialorder %v646, 8.507059e+37
    %v648 = vand.u32 %v635, 2147483648
    %v649 = vor.u32 1.1754944e-38, %v648
    %v650 = vsel %vm647, %v649, %v645
    %v651 = vmul.f32 1.0, %v650
    %v652 = vrcp.pop %v636
    %v653 = vmul.f32 %v636, %v652
    %v654 = vsub.f32 1.0, %v653
    %v655 = vmul.f32 %v652, %v654
    %v656 = vadd.f32 %v652, %v655
    %vm657 = vweird.f32 %v636
    %vm658 = vweird.f32 %v652
    %vm659 = vmor %vm657, %vm658
    %v660 = vsel %vm659, %v652, %v656
    %v661 = vand.u32 2147483647, %v636
    %vm662 = vcmp.eq.f32.partialorder %v661, 8.507059e+37
    %v663 = vand.u32 %v636, 2147483648
    %v664 = vor.u32 1.1754944e-38, %v663
    %v665 = vsel %vm662, %v664, %v660
    %v666 = vmul.f32 1.0, %v665
    %v667 = vxor.u32 %v569, 2147483648
    %v668 = vxor.u32 %v571, 2147483648
    %v669 = vmul.f32 %v667, 1.442695
    %v670 = vpow.pop %v669
    %v671 = vmul.f32 %v668, 1.442695
    %v672 = vpow.pop %v671
    %v673 = vadd.f32 %v670, 1.0
    %v674 = vadd.f32 %v672, 1.0
    %v675 = vrcp.pop %v673
    %v676 = vmul.f32 %v673, %v675
    %v677 = vsub.f32 1.0, %v676
    %v678 = vmul.f32 %v675, %v677
    %v679 = vadd.f32 %v675, %v678
    %vm680 = vweird.f32 %v673
    %vm681 = vweird.f32 %v675
    %vm682 = vmor %vm680, %vm681
    %v683 = vsel %vm682, %v675, %v679
    %v684 = vand.u32 2147483647, %v673
    %vm685 = vcmp.eq.f32.partialorder %v684, 8.507059e+37
    %v686 = vand.u32 %v673, 2147483648
    %v687 = vor.u32 1.1754944e-38, %v686
    %v688 = vsel %vm685, %v687, %v683
    %v689 = vmul.f32 1.0, %v688
    %v690 = vrcp.pop %v674
    %v691 = vmul.f32 %v674, %v690
    %v692 = vsub.f32 1.0, %v691
    %v693 = vmul.f32 %v690, %v692
    %v694 = vadd.f32 %v690, %v693
    %vm695 = vweird.f32 %v674
    %vm696 = vweird.f32 %v690
    %vm697 = vmor %vm695, %vm696
    %v698 = vsel %vm697, %v690, %v694
    %v699 = vand.u32 2147483647, %v674
    %vm700 = vcmp.eq.f32.partialorder %v699, 8.507059e+37
    %v701 = vand.u32 %v674, 2147483648
    %v702 = vor.u32 1.1754944e-38, %v701
    %v703 = vsel %vm700, %v702, %v698
    %v704 = vmul.f32 1.0, %v703
    %v705 = vmul.f32 %v651, %v625
    %v706 = vmul.f32 %v666, %v627
    %v707 = vadd.f32 %v597, %v705
    %v708 = vadd.f32 %v599, %v706
    %v709 = vtanh.pop %v707
    %v710 = vtanh.pop %v708
    %v711 = vsub.f32 1.0, %v689
    %v712 = vsub.f32 1.0, %v704
    %v713 = vmul.f32 %v711, %v709
    %v714 = vmul.f32 %v712, %v710
    %v715 = vmul.f32 %v689, %v80
    %v716 = vmul.f32 %v704, %v81
    %v717 = vadd.f32 %v713, %v715
    %v718 = vadd.f32 %v714, %v716
    %v719 = vpack.c.bf16 %v717, %v717
    %v720 = vpack.c.bf16 %v718, %v718
    %v723 = vunpack.c.l.b16 %v719
    %v724 = vunpack.c.l.b16 %v720
    %v725 = vpack.c.b16 %v724, %v723
    %727 = vmatpush.bf16.msra.mxu0 0
    %728 = vmatpush.bf16.msra.mxu0 0
    %729 = vmatpush.bf16.msra.mxu0 0
    %730 = vmatpush.bf16.msra.mxu0 0
    %731 = vmatpush.bf16.msra.mxu0 0
    %732 = vmatpush.bf16.msra.mxu0 0
    %733 = vmatpush.bf16.msra.mxu0 0
    %734 = vmatpush.bf16.msra.mxu0 %v725
    %735 = vmatmul.bf16.gmra.mxu0 %v100
    %v736 = vpop.f32.mrf.mxu0
    %v737 = vadd.f32 0.0, %v736
    %v738 = vpop.f32.mrf.mxu0
    %v739 = vadd.f32 0.0, %v738
    %740 = vdwg.mxu0
    %v741 = vpack.c.bf16 %v737, %v737
    %v742 = vpack.c.bf16 %v739, %v739
    %v745 = vunpack.c.l.b16 %v741
    %v746 = vunpack.c.l.b16 %v742
    %v747 = vpack.c.b16 %v746, %v745
    %s749 = scalar_lea.vmem [#allocation7], 512
    %v750 = vld [vmem:[%s749] sm:$0xff]
    %v751 = vld [vmem:[%s749 + $0x8] sm:$0xff]
    %v752 = vld [vmem:[%s749 + $0x10] sm:$0xff]
    %v753 = vld [vmem:[%s749 + $0x18] sm:$0xff]
    %v754 = vld [vmem:[%s749 + $0x20] sm:$0xff]
    %v755 = vld [vmem:[%s749 + $0x28] sm:$0xff]
    %v756 = vld [vmem:[%s749 + $0x30] sm:$0xff]
    %v757 = vld [vmem:[%s749 + $0x38] sm:$0xff]
    %v758 = vld [vmem:[%s749 + $0x40] sm:$0xff]
    %v759 = vld [vmem:[%s749 + $0x48] sm:$0xff]
    %v760 = vld [vmem:[%s749 + $0x50] sm:$0xff]
    %v761 = vld [vmem:[%s749 + $0x58] sm:$0xff]
    %v762 = vld [vmem:[%s749 + $0x60] sm:$0xff]
    %v763 = vld [vmem:[%s749 + $0x68] sm:$0xff]
    %v764 = vld [vmem:[%s749 + $0x70] sm:$0xff]
    %v765 = vld [vmem:[%s749 + $0x78] sm:$0xff]
    %v766 = vld [vmem:[%s749 + $0x80] sm:$0xff]
    %v767 = vld [vmem:[%s749 + $0x88] sm:$0xff]
    %v768 = vld [vmem:[%s749 + $0x90] sm:$0xff]
    %v769 = vld [vmem:[%s749 + $0x98] sm:$0xff]
    %v770 = vld [vmem:[%s749 + $0xa0] sm:$0xff]
    %v771 = vld [vmem:[%s749 + $0xa8] sm:$0xff]
    %v772 = vld [vmem:[%s749 + $0xb0] sm:$0xff]
    %v773 = vld [vmem:[%s749 + $0xb8] sm:$0xff]
    %v774 = vld [vmem:[%s749 + $0xc0] sm:$0xff]
    %v775 = vld [vmem:[%s749 + $0xc8] sm:$0xff]
    %v776 = vld [vmem:[%s749 + $0xd0] sm:$0xff]
    %v777 = vld [vmem:[%s749 + $0xd8] sm:$0xff]
    %v778 = vld [vmem:[%s749 + $0xe0] sm:$0xff]
    %v779 = vld [vmem:[%s749 + $0xe8] sm:$0xff]
    %v780 = vld [vmem:[%s749 + $0xf0] sm:$0xff]
    %v781 = vld [vmem:[%s749 + $0xf8] sm:$0xff]
    %v782 = vld [vmem:[%s749 + $0x100] sm:$0xff]
    %v783 = vld [vmem:[%s749 + $0x108] sm:$0xff]
    %v784 = vld [vmem:[%s749 + $0x110] sm:$0xff]
    %v785 = vld [vmem:[%s749 + $0x118] sm:$0xff]
    %v786 = vld [vmem:[%s749 + $0x120] sm:$0xff]
    %v787 = vld [vmem:[%s749 + $0x128] sm:$0xff]
    %v788 = vld [vmem:[%s749 + $0x130] sm:$0xff]
    %v789 = vld [vmem:[%s749 + $0x138] sm:$0xff]
    %v790 = vld [vmem:[%s749 + $0x140] sm:$0xff]
    %v791 = vld [vmem:[%s749 + $0x148] sm:$0xff]
    %v792 = vld [vmem:[%s749 + $0x150] sm:$0xff]
    %v793 = vld [vmem:[%s749 + $0x158] sm:$0xff]
    %v794 = vld [vmem:[%s749 + $0x160] sm:$0xff]
    %v795 = vld [vmem:[%s749 + $0x168] sm:$0xff]
    %v796 = vld [vmem:[%s749 + $0x170] sm:$0xff]
    %v797 = vld [vmem:[%s749 + $0x178] sm:$0xff]
    %v798 = vld [vmem:[%s749 + $0x180] sm:$0xff]
    %v799 = vld [vmem:[%s749 + $0x188] sm:$0xff]
    %v800 = vld [vmem:[%s749 + $0x190] sm:$0xff]
    %v801 = vld [vmem:[%s749 + $0x198] sm:$0xff]
    %v802 = vld [vmem:[%s749 + $0x1a0] sm:$0xff]
    %v803 = vld [vmem:[%s749 + $0x1a8] sm:$0xff]
    %v804 = vld [vmem:[%s749 + $0x1b0] sm:$0xff]
    %v805 = vld [vmem:[%s749 + $0x1b8] sm:$0xff]
    %v806 = vld [vmem:[%s749 + $0x1c0] sm:$0xff]
    %v807 = vld [vmem:[%s749 + $0x1c8] sm:$0xff]
    %v808 = vld [vmem:[%s749 + $0x1d0] sm:$0xff]
    %v809 = vld [vmem:[%s749 + $0x1d8] sm:$0xff]
    %v810 = vld [vmem:[%s749 + $0x1e0] sm:$0xff]
    %v811 = vld [vmem:[%s749 + $0x1e8] sm:$0xff]
    %v812 = vld [vmem:[%s749 + $0x1f0] sm:$0xff]
    %v813 = vld [vmem:[%s749 + $0x1f8] sm:$0xff]
    %v878 = vunpack.c.l.b16 %v750
    %v879 = vunpack.c.h.b16 %v750
    %v880 = vunpack.c.l.b16 %v751
    %v881 = vunpack.c.h.b16 %v751
    %v882 = vunpack.c.l.b16 %v752
    %v883 = vunpack.c.h.b16 %v752
    %v884 = vunpack.c.l.b16 %v753
    %v885 = vunpack.c.h.b16 %v753
    %v886 = vunpack.c.l.b16 %v754
    %v887 = vunpack.c.h.b16 %v754
    %v888 = vunpack.c.l.b16 %v755
    %v889 = vunpack.c.h.b16 %v755
    %v890 = vunpack.c.l.b16 %v756
    %v891 = vunpack.c.h.b16 %v756
    %v892 = vunpack.c.l.b16 %v757
    %v893 = vunpack.c.h.b16 %v757
    %v894 = vunpack.c.l.b16 %v758
    %v895 = vunpack.c.h.b16 %v758
    %v896 = vunpack.c.l.b16 %v759
    %v897 = vunpack.c.h.b16 %v759
    %v898 = vunpack.c.l.b16 %v760
    %v899 = vunpack.c.h.b16 %v760
    %v900 = vunpack.c.l.b16 %v761
    %v901 = vunpack.c.h.b16 %v761
    %v902 = vunpack.c.l.b16 %v762
    %v903 = vunpack.c.h.b16 %v762
    %v904 = vunpack.c.l.b16 %v763
    %v905 = vunpack.c.h.b16 %v763
    %v906 = vunpack.c.l.b16 %v764
    %v907 = vunpack.c.h.b16 %v764
    %v908 = vunpack.c.l.b16 %v765
    %v909 = vunpack.c.h.b16 %v765
    %v910 = vunpack.c.l.b16 %v766
    %v911 = vunpack.c.h.b16 %v766
    %v912 = vunpack.c.l.b16 %v767
    %v913 = vunpack.c.h.b16 %v767
    %v914 = vunpack.c.l.b16 %v768
    %v915 = vunpack.c.h.b16 %v768
    %v916 = vunpack.c.l.b16 %v769
    %v917 = vunpack.c.h.b16 %v769
    %v918 = vunpack.c.l.b16 %v770
    %v919 = vunpack.c.h.b16 %v770
    %v920 = vunpack.c.l.b16 %v771
    %v921 = vunpack.c.h.b16 %v771
    %v922 = vunpack.c.l.b16 %v772
    %v923 = vunpack.c.h.b16 %v772
    %v924 = vunpack.c.l.b16 %v773
    %v925 = vunpack.c.h.b16 %v773
    %v926 = vunpack.c.l.b16 %v774
    %v927 = vunpack.c.h.b16 %v774
    %v928 = vunpack.c.l.b16 %v775
    %v929 = vunpack.c.h.b16 %v775
    %v930 = vunpack.c.l.b16 %v776
    %v931 = vunpack.c.h.b16 %v776
    %v932 = vunpack.c.l.b16 %v777
    %v933 = vunpack.c.h.b16 %v777
    %v934 = vunpack.c.l.b16 %v778
    %v935 = vunpack.c.h.b16 %v778
    %v936 = vunpack.c.l.b16 %v779
    %v937 = vunpack.c.h.b16 %v779
    %v938 = vunpack.c.l.b16 %v780
    %v939 = vunpack.c.h.b16 %v780
    %v940 = vunpack.c.l.b16 %v781
    %v941 = vunpack.c.h.b16 %v781
    %v942 = vunpack.c.l.b16 %v782
    %v943 = vunpack.c.h.b16 %v782
    %v944 = vunpack.c.l.b16 %v783
    %v945 = vunpack.c.h.b16 %v783
    %v946 = vunpack.c.l.b16 %v784
    %v947 = vunpack.c.h.b16 %v784
    %v948 = vunpack.c.l.b16 %v785
    %v949 = vunpack.c.h.b16 %v785
    %v950 = vunpack.c.l.b16 %v786
    %v951 = vunpack.c.h.b16 %v786
    %v952 = vunpack.c.l.b16 %v787
    %v953 = vunpack.c.h.b16 %v787
    %v954 = vunpack.c.l.b16 %v788
    %v955 = vunpack.c.h.b16 %v788
    %v956 = vunpack.c.l.b16 %v789
    %v957 = vunpack.c.h.b16 %v789
    %v958 = vunpack.c.l.b16 %v790
    %v959 = vunpack.c.h.b16 %v790
    %v960 = vunpack.c.l.b16 %v791
    %v961 = vunpack.c.h.b16 %v791
    %v962 = vunpack.c.l.b16 %v792
    %v963 = vunpack.c.h.b16 %v792
    %v964 = vunpack.c.l.b16 %v793
    %v965 = vunpack.c.h.b16 %v793
    %v966 = vunpack.c.l.b16 %v794
    %v967 = vunpack.c.h.b16 %v794
    %v968 = vunpack.c.l.b16 %v795
    %v969 = vunpack.c.h.b16 %v795
    %v970 = vunpack.c.l.b16 %v796
    %v971 = vunpack.c.h.b16 %v796
    %v972 = vunpack.c.l.b16 %v797
    %v973 = vunpack.c.h.b16 %v797
    %v974 = vunpack.c.l.b16 %v798
    %v975 = vunpack.c.h.b16 %v798
    %v976 = vunpack.c.l.b16 %v799
    %v977 = vunpack.c.h.b16 %v799
    %v978 = vunpack.c.l.b16 %v800
    %v979 = vunpack.c.h.b16 %v800
    %v980 = vunpack.c.l.b16 %v801
    %v981 = vunpack.c.h.b16 %v801
    %v982 = vunpack.c.l.b16 %v802
    %v983 = vunpack.c.h.b16 %v802
    %v984 = vunpack.c.l.b16 %v803
    %v985 = vunpack.c.h.b16 %v803
    %v986 = vunpack.c.l.b16 %v804
    %v987 = vunpack.c.h.b16 %v804
    %v988 = vunpack.c.l.b16 %v805
    %v989 = vunpack.c.h.b16 %v805
    %v990 = vunpack.c.l.b16 %v806
    %v991 = vunpack.c.h.b16 %v806
    %v992 = vunpack.c.l.b16 %v807
    %v993 = vunpack.c.h.b16 %v807
    %v994 = vunpack.c.l.b16 %v808
    %v995 = vunpack.c.h.b16 %v808
    %v996 = vunpack.c.l.b16 %v809
    %v997 = vunpack.c.h.b16 %v809
    %v998 = vunpack.c.l.b16 %v810
    %v999 = vunpack.c.h.b16 %v810
    %v1000 = vunpack.c.l.b16 %v811
    %v1001 = vunpack.c.h.b16 %v811
    %v1002 = vunpack.c.l.b16 %v812
    %v1003 = vunpack.c.h.b16 %v812
    %v1004 = vunpack.c.l.b16 %v813
    %v1005 = vunpack.c.h.b16 %v813
    %v1006 = vpack.c.b16 %v882, %v878
    %v1007 = vpack.c.b16 %v883, %v879
    %v1008 = vpack.c.b16 %v884, %v880
    %v1009 = vpack.c.b16 %v885, %v881
    %v1010 = vpack.c.b16 %v890, %v886
    %v1011 = vpack.c.b16 %v891, %v887
    %v1012 = vpack.c.b16 %v892, %v888
    %v1013 = vpack.c.b16 %v893, %v889
    %v1014 = vpack.c.b16 %v898, %v894
    %v1015 = vpack.c.b16 %v899, %v895
    %v1016 = vpack.c.b16 %v900, %v896
    %v1017 = vpack.c.b16 %v901, %v897
    %v1018 = vpack.c.b16 %v906, %v902
    %v1019 = vpack.c.b16 %v907, %v903
    %v1020 = vpack.c.b16 %v908, %v904
    %v1021 = vpack.c.b16 %v909, %v905
    %v1022 = vpack.c.b16 %v914, %v910
    %v1023 = vpack.c.b16 %v915, %v911
    %v1024 = vpack.c.b16 %v916, %v912
    %v1025 = vpack.c.b16 %v917, %v913
    %v1026 = vpack.c.b16 %v922, %v918
    %v1027 = vpack.c.b16 %v923, %v919
    %v1028 = vpack.c.b16 %v924, %v920
    %v1029 = vpack.c.b16 %v925, %v921
    %v1030 = vpack.c.b16 %v930, %v926
    %v1031 = vpack.c.b16 %v931, %v927
    %v1032 = vpack.c.b16 %v932, %v928
    %v1033 = vpack.c.b16 %v933, %v929
    %v1034 = vpack.c.b16 %v938, %v934
    %v1035 = vpack.c.b16 %v939, %v935
    %v1036 = vpack.c.b16 %v940, %v936
    %v1037 = vpack.c.b16 %v941, %v937
    %v1038 = vpack.c.b16 %v946, %v942
    %v1039 = vpack.c.b16 %v947, %v943
    %v1040 = vpack.c.b16 %v948, %v944
    %v1041 = vpack.c.b16 %v949, %v945
    %v1042 = vpack.c.b16 %v954, %v950
    %v1043 = vpack.c.b16 %v955, %v951
    %v1044 = vpack.c.b16 %v956, %v952
    %v1045 = vpack.c.b16 %v957, %v953
    %v1046 = vpack.c.b16 %v962, %v958
    %v1047 = vpack.c.b16 %v963, %v959
    %v1048 = vpack.c.b16 %v964, %v960
    %v1049 = vpack.c.b16 %v965, %v961
    %v1050 = vpack.c.b16 %v970, %v966
    %v1051 = vpack.c.b16 %v971, %v967
    %v1052 = vpack.c.b16 %v972, %v968
    %v1053 = vpack.c.b16 %v973, %v969
    %v1054 = vpack.c.b16 %v978, %v974
    %v1055 = vpack.c.b16 %v979, %v975
    %v1056 = vpack.c.b16 %v980, %v976
    %v1057 = vpack.c.b16 %v981, %v977
    %v1058 = vpack.c.b16 %v986, %v982
    %v1059 = vpack.c.b16 %v987, %v983
    %v1060 = vpack.c.b16 %v988, %v984
    %v1061 = vpack.c.b16 %v989, %v985
    %v1062 = vpack.c.b16 %v994, %v990
    %v1063 = vpack.c.b16 %v995, %v991
    %v1064 = vpack.c.b16 %v996, %v992
    %v1065 = vpack.c.b16 %v997, %v993
    %v1066 = vpack.c.b16 %v1002, %v998
    %v1067 = vpack.c.b16 %v1003, %v999
    %v1068 = vpack.c.b16 %v1004, %v1000
    %v1069 = vpack.c.b16 %v1005, %v1001
    %1134 = vmatpush.bf16.msra.mxu0 %v1034
    %1135 = vmatpush.bf16.msra.mxu0 %v1030
    %1136 = vmatpush.bf16.msra.mxu0 %v1026
    %1137 = vmatpush.bf16.msra.mxu0 %v1022
    %1138 = vmatpush.bf16.msra.mxu0 %v1018
    %1139 = vmatpush.bf16.msra.mxu0 %v1014
    %1140 = vmatpush.bf16.msra.mxu0 %v1010
    %1141 = vmatpush.bf16.msra.mxu0 %v1006
    %1142 = vmatmul.bf16.gmra.mxu0 %v747
    %v1143 = vpop.f32.mrf.mxu0
    %v1144 = vadd.f32 %v189, %v1143
    %v1145 = vpop.f32.mrf.mxu0
    %v1146 = vadd.f32 %v189, %v1145
    %1147 = vdwg.mxu0
    %1148 = vmatpush.bf16.msra.mxu0 %v1066
    %1149 = vmatpush.bf16.msra.mxu0 %v1062
    %1150 = vmatpush.bf16.msra.mxu0 %v1058
    %1151 = vmatpush.bf16.msra.mxu0 %v1054
    %1152 = vmatpush.bf16.msra.mxu0 %v1050
    %1153 = vmatpush.bf16.msra.mxu0 %v1046
    %1154 = vmatpush.bf16.msra.mxu0 %v1042
    %1155 = vmatpush.bf16.msra.mxu0 %v1038
    %1156 = vmatmul.bf16.gmra.mxu0 %v725
    %v1157 = vpop.f32.mrf.mxu0
    %v1158 = vadd.f32 %v1144, %v1157
    %v1159 = vpop.f32.mrf.mxu0
    %v1160 = vadd.f32 %v1146, %v1159
    %1161 = vdwg.mxu0
    %1162 = vmatpush.bf16.msra.mxu0 %v1035
    %1163 = vmatpush.bf16.msra.mxu0 %v1031
    %1164 = vmatpush.bf16.msra.mxu0 %v1027
    %1165 = vmatpush.bf16.msra.mxu0 %v1023
    %1166 = vmatpush.bf16.msra.mxu0 %v1019
    %1167 = vmatpush.bf16.msra.mxu0 %v1015
    %1168 = vmatpush.bf16.msra.mxu0 %v1011
    %1169 = vmatpush.bf16.msra.mxu0 %v1007
    %1170 = vmatmul.bf16.gmra.mxu0 %v747
    %v1171 = vpop.f32.mrf.mxu0
    %v1172 = vadd.f32 %v190, %v1171
    %v1173 = vpop.f32.mrf.mxu0
    %v1174 = vadd.f32 %v190, %v1173
    %1175 = vdwg.mxu0
    %1176 = vmatpush.bf16.msra.mxu0 %v1067
    %1177 = vmatpush.bf16.msra.mxu0 %v1063
    %1178 = vmatpush.bf16.msra.mxu0 %v1059
    %1179 = vmatpush.bf16.msra.mxu0 %v1055
    %1180 = vmatpush.bf16.msra.mxu0 %v1051
    %1181 = vmatpush.bf16.msra.mxu0 %v1047
    %1182 = vmatpush.bf16.msra.mxu0 %v1043
    %1183 = vmatpush.bf16.msra.mxu0 %v1039
    %1184 = vmatmul.bf16.gmra.mxu0 %v725
    %v1185 = vpop.f32.mrf.mxu0
    %v1186 = vadd.f32 %v1172, %v1185
    %v1187 = vpop.f32.mrf.mxu0
    %v1188 = vadd.f32 %v1174, %v1187
    %1189 = vdwg.mxu0
    %1190 = vmatpush.bf16.msra.mxu0 %v1036
    %1191 = vmatpush.bf16.msra.mxu0 %v1032
    %1192 = vmatpush.bf16.msra.mxu0 %v1028
    %1193 = vmatpush.bf16.msra.mxu0 %v1024
    %1194 = vmatpush.bf16.msra.mxu0 %v1020
    %1195 = vmatpush.bf16.msra.mxu0 %v1016
    %1196 = vmatpush.bf16.msra.mxu0 %v1012
    %1197 = vmatpush.bf16.msra.mxu0 %v1008
    %1198 = vmatmul.bf16.gmra.mxu0 %v747
    %v1199 = vpop.f32.mrf.mxu0
    %v1200 = vadd.f32 %v191, %v1199
    %v1201 = vpop.f32.mrf.mxu0
    %v1202 = vadd.f32 %v191, %v1201
    %1203 = vdwg.mxu0
    %1204 = vmatpush.bf16.msra.mxu0 %v1068
    %1205 = vmatpush.bf16.msra.mxu0 %v1064
    %1206 = vmatpush.bf16.msra.mxu0 %v1060
    %1207 = vmatpush.bf16.msra.mxu0 %v1056
    %1208 = vmatpush.bf16.msra.mxu0 %v1052
    %1209 = vmatpush.bf16.msra.mxu0 %v1048
    %1210 = vmatpush.bf16.msra.mxu0 %v1044
    %1211 = vmatpush.bf16.msra.mxu0 %v1040
    %1212 = vmatmul.bf16.gmra.mxu0 %v725
    %v1213 = vpop.f32.mrf.mxu0
    %v1214 = vadd.f32 %v1200, %v1213
    %v1215 = vpop.f32.mrf.mxu0
    %v1216 = vadd.f32 %v1202, %v1215
    %1217 = vdwg.mxu0
    %1218 = vmatpush.bf16.msra.mxu0 %v1037
    %1219 = vmatpush.bf16.msra.mxu0 %v1033
    %1220 = vmatpush.bf16.msra.mxu0 %v1029
    %1221 = vmatpush.bf16.msra.mxu0 %v1025
    %1222 = vmatpush.bf16.msra.mxu0 %v1021
    %1223 = vmatpush.bf16.msra.mxu0 %v1017
    %1224 = vmatpush.bf16.msra.mxu0 %v1013
    %1225 = vmatpush.bf16.msra.mxu0 %v1009
    %1226 = vmatmul.bf16.gmra.mxu0 %v747
    %v1227 = vpop.f32.mrf.mxu0
    %v1228 = vadd.f32 %v192, %v1227
    %v1229 = vpop.f32.mrf.mxu0
    %v1230 = vadd.f32 %v192, %v1229
    %1231 = vdwg.mxu0
    %1232 = vmatpush.bf16.msra.mxu0 %v1069
    %1233 = vmatpush.bf16.msra.mxu0 %v1065
    %1234 = vmatpush.bf16.msra.mxu0 %v1061
    %1235 = vmatpush.bf16.msra.mxu0 %v1057
    %1236 = vmatpush.bf16.msra.mxu0 %v1053
    %1237 = vmatpush.bf16.msra.mxu0 %v1049
    %1238 = vmatpush.bf16.msra.mxu0 %v1045
    %1239 = vmatpush.bf16.msra.mxu0 %v1041
    %1240 = vmatmul.bf16.gmra.mxu0 %v725
    %v1241 = vpop.f32.mrf.mxu0
    %v1242 = vadd.f32 %v1228, %v1241
    %v1243 = vpop.f32.mrf.mxu0
    %v1244 = vadd.f32 %v1230, %v1243
    %1245 = vdwg.mxu0
    %v1246 = vxor.u32 %v1158, 2147483648
    %v1247 = vxor.u32 %v1160, 2147483648
    %v1248 = vmul.f32 %v1246, 1.442695
    %v1249 = vpow.pop %v1248
    %v1250 = vmul.f32 %v1247, 1.442695
    %v1251 = vpow.pop %v1250
    %v1252 = vadd.f32 %v1249, 1.0
    %v1253 = vadd.f32 %v1251, 1.0
    %v1254 = vrcp.pop %v1252
    %v1255 = vmul.f32 %v1252, %v1254
    %v1256 = vsub.f32 1.0, %v1255
    %v1257 = vmul.f32 %v1254, %v1256
    %v1258 = vadd.f32 %v1254, %v1257
    %vm1259 = vweird.f32 %v1252
    %vm1260 = vweird.f32 %v1254
    %vm1261 = vmor %vm1259, %vm1260
    %v1262 = vsel %vm1261, %v1254, %v1258
    %v1263 = vand.u32 2147483647, %v1252
    %vm1264 = vcmp.eq.f32.partialorder %v1263, 8.507059e+37
    %v1265 = vand.u32 %v1252, 2147483648
    %v1266 = vor.u32 1.1754944e-38, %v1265
    %v1267 = vsel %vm1264, %v1266, %v1262
    %v1268 = vmul.f32 1.0, %v1267
    %v1269 = vrcp.pop %v1253
    %v1270 = vmul.f32 %v1253, %v1269
    %v1271 = vsub.f32 1.0, %v1270
    %v1272 = vmul.f32 %v1269, %v1271
    %v1273 = vadd.f32 %v1269, %v1272
    %vm1274 = vweird.f32 %v1253
    %vm1275 = vweird.f32 %v1269
    %vm1276 = vmor %vm1274, %vm1275
    %v1277 = vsel %vm1276, %v1269, %v1273
    %v1278 = vand.u32 2147483647, %v1253
    %vm1279 = vcmp.eq.f32.partialorder %v1278, 8.507059e+37
    %v1280 = vand.u32 %v1253, 2147483648
    %v1281 = vor.u32 1.1754944e-38, %v1280
    %v1282 = vsel %vm1279, %v1281, %v1277
    %v1283 = vmul.f32 1.0, %v1282
    %v1284 = vxor.u32 %v1186, 2147483648
    %v1285 = vxor.u32 %v1188, 2147483648
    %v1286 = vmul.f32 %v1284, 1.442695
    %v1287 = vpow.pop %v1286
    %v1288 = vmul.f32 %v1285, 1.442695
    %v1289 = vpow.pop %v1288
    %v1290 = vadd.f32 %v1287, 1.0
    %v1291 = vadd.f32 %v1289, 1.0
    %v1292 = vrcp.pop %v1290
    %v1293 = vmul.f32 %v1290, %v1292
    %v1294 = vsub.f32 1.0, %v1293
    %v1295 = vmul.f32 %v1292, %v1294
    %v1296 = vadd.f32 %v1292, %v1295
    %vm1297 = vweird.f32 %v1290
    %vm1298 = vweird.f32 %v1292
    %vm1299 = vmor %vm1297, %vm1298
    %v1300 = vsel %vm1299, %v1292, %v1296
    %v1301 = vand.u32 2147483647, %v1290
    %vm1302 = vcmp.eq.f32.partialorder %v1301, 8.507059e+37
    %v1303 = vand.u32 %v1290, 2147483648
    %v1304 = vor.u32 1.1754944e-38, %v1303
    %v1305 = vsel %vm1302, %v1304, %v1300
    %v1306 = vmul.f32 1.0, %v1305
    %v1307 = vrcp.pop %v1291
    %v1308 = vmul.f32 %v1291, %v1307
    %v1309 = vsub.f32 1.0, %v1308
    %v1310 = vmul.f32 %v1307, %v1309
    %v1311 = vadd.f32 %v1307, %v1310
    %vm1312 = vweird.f32 %v1291
    %vm1313 = vweird.f32 %v1307
    %vm1314 = vmor %vm1312, %vm1313
    %v1315 = vsel %vm1314, %v1307, %v1311
    %v1316 = vand.u32 2147483647, %v1291
    %vm1317 = vcmp.eq.f32.partialorder %v1316, 8.507059e+37
    %v1318 = vand.u32 %v1291, 2147483648
    %v1319 = vor.u32 1.1754944e-38, %v1318
    %v1320 = vsel %vm1317, %v1319, %v1315
    %v1321 = vmul.f32 1.0, %v1320
    %v1322 = vmul.f32 %v1268, %v1242
    %v1323 = vmul.f32 %v1283, %v1244
    %v1324 = vadd.f32 %v1214, %v1322
    %v1325 = vadd.f32 %v1216, %v1323
    %v1326 = vtanh.pop %v1324
    %v1327 = vtanh.pop %v1325
    %v1328 = vsub.f32 1.0, %v1306
    %v1329 = vsub.f32 1.0, %v1321
    %v1330 = vmul.f32 %v1328, %v1326
    %v1331 = vmul.f32 %v1329, %v1327
    %v1332 = vmul.f32 %v1306, %v717
    %v1333 = vmul.f32 %v1321, %v718
    %v1334 = vadd.f32 %v1330, %v1332
    %v1335 = vadd.f32 %v1331, %v1333
    %v1336 = vpack.c.bf16 %v1334, %v1334
    %v1337 = vpack.c.bf16 %v1335, %v1335
    %v1340 = vunpack.c.l.b16 %v1336
    %v1341 = vunpack.c.l.b16 %v1337
    %v1342 = vpack.c.b16 %v1341, %v1340
    %1344 = vmatpush.bf16.msra.mxu0 0
    %1345 = vmatpush.bf16.msra.mxu0 0
    %1346 = vmatpush.bf16.msra.mxu0 0
    %1347 = vmatpush.bf16.msra.mxu0 0
    %1348 = vmatpush.bf16.msra.mxu0 0
    %1349 = vmatpush.bf16.msra.mxu0 0
    %1350 = vmatpush.bf16.msra.mxu0 0
    %1351 = vmatpush.bf16.msra.mxu0 %v1342
    %1352 = vmatmul.bf16.gmra.mxu0 %v100
    %v1353 = vpop.f32.mrf.mxu0
    %v1354 = vadd.f32 0.0, %v1353
    %v1355 = vpop.f32.mrf.mxu0
    %v1356 = vadd.f32 0.0, %v1355
    %1357 = vdwg.mxu0
    %v1358 = vpack.c.bf16 %v1354, %v1354
    %v1359 = vpack.c.bf16 %v1356, %v1356
    %v1362 = vunpack.c.l.b16 %v1358
    %v1363 = vunpack.c.l.b16 %v1359
    %v1364 = vpack.c.b16 %v1363, %v1362
    %s1366 = scalar_lea.vmem [#allocation7], 1024
    %v1367 = vld [vmem:[%s1366] sm:$0xff]
    %v1368 = vld [vmem:[%s1366 + $0x8] sm:$0xff]
    %v1369 = vld [vmem:[%s1366 + $0x10] sm:$0xff]
    %v1370 = vld [vmem:[%s1366 + $0x18] sm:$0xff]
    %v1371 = vld [vmem:[%s1366 + $0x20] sm:$0xff]
    %v1372 = vld [vmem:[%s1366 + $0x28] sm:$0xff]
    %v1373 = vld [vmem:[%s1366 + $0x30] sm:$0xff]
    %v1374 = vld [vmem:[%s1366 + $0x38] sm:$0xff]
    %v1375 = vld [vmem:[%s1366 + $0x40] sm:$0xff]
    %v1376 = vld [vmem:[%s1366 + $0x48] sm:$0xff]
    %v1377 = vld [vmem:[%s1366 + $0x50] sm:$0xff]
    %v1378 = vld [vmem:[%s1366 + $0x58] sm:$0xff]
    %v1379 = vld [vmem:[%s1366 + $0x60] sm:$0xff]
    %v1380 = vld [vmem:[%s1366 + $0x68] sm:$0xff]
    %v1381 = vld [vmem:[%s1366 + $0x70] sm:$0xff]
    %v1382 = vld [vmem:[%s1366 + $0x78] sm:$0xff]
    %v1383 = vld [vmem:[%s1366 + $0x80] sm:$0xff]
    %v1384 = vld [vmem:[%s1366 + $0x88] sm:$0xff]
    %v1385 = vld [vmem:[%s1366 + $0x90] sm:$0xff]
    %v1386 = vld [vmem:[%s1366 + $0x98] sm:$0xff]
    %v1387 = vld [vmem:[%s1366 + $0xa0] sm:$0xff]
    %v1388 = vld [vmem:[%s1366 + $0xa8] sm:$0xff]
    %v1389 = vld [vmem:[%s1366 + $0xb0] sm:$0xff]
    %v1390 = vld [vmem:[%s1366 + $0xb8] sm:$0xff]
    %v1391 = vld [vmem:[%s1366 + $0xc0] sm:$0xff]
    %v1392 = vld [vmem:[%s1366 + $0xc8] sm:$0xff]
    %v1393 = vld [vmem:[%s1366 + $0xd0] sm:$0xff]
    %v1394 = vld [vmem:[%s1366 + $0xd8] sm:$0xff]
    %v1395 = vld [vmem:[%s1366 + $0xe0] sm:$0xff]
    %v1396 = vld [vmem:[%s1366 + $0xe8] sm:$0xff]
    %v1397 = vld [vmem:[%s1366 + $0xf0] sm:$0xff]
    %v1398 = vld [vmem:[%s1366 + $0xf8] sm:$0xff]
    %v1399 = vld [vmem:[%s1366 + $0x100] sm:$0xff]
    %v1400 = vld [vmem:[%s1366 + $0x108] sm:$0xff]
    %v1401 = vld [vmem:[%s1366 + $0x110] sm:$0xff]
    %v1402 = vld [vmem:[%s1366 + $0x118] sm:$0xff]
    %v1403 = vld [vmem:[%s1366 + $0x120] sm:$0xff]
    %v1404 = vld [vmem:[%s1366 + $0x128] sm:$0xff]
    %v1405 = vld [vmem:[%s1366 + $0x130] sm:$0xff]
    %v1406 = vld [vmem:[%s1366 + $0x138] sm:$0xff]
    %v1407 = vld [vmem:[%s1366 + $0x140] sm:$0xff]
    %v1408 = vld [vmem:[%s1366 + $0x148] sm:$0xff]
    %v1409 = vld [vmem:[%s1366 + $0x150] sm:$0xff]
    %v1410 = vld [vmem:[%s1366 + $0x158] sm:$0xff]
    %v1411 = vld [vmem:[%s1366 + $0x160] sm:$0xff]
    %v1412 = vld [vmem:[%s1366 + $0x168] sm:$0xff]
    %v1413 = vld [vmem:[%s1366 + $0x170] sm:$0xff]
    %v1414 = vld [vmem:[%s1366 + $0x178] sm:$0xff]
    %v1415 = vld [vmem:[%s1366 + $0x180] sm:$0xff]
    %v1416 = vld [vmem:[%s1366 + $0x188] sm:$0xff]
    %v1417 = vld [vmem:[%s1366 + $0x190] sm:$0xff]
    %v1418 = vld [vmem:[%s1366 + $0x198] sm:$0xff]
    %v1419 = vld [vmem:[%s1366 + $0x1a0] sm:$0xff]
    %v1420 = vld [vmem:[%s1366 + $0x1a8] sm:$0xff]
    %v1421 = vld [vmem:[%s1366 + $0x1b0] sm:$0xff]
    %v1422 = vld [vmem:[%s1366 + $0x1b8] sm:$0xff]
    %v1423 = vld [vmem:[%s1366 + $0x1c0] sm:$0xff]
    %v1424 = vld [vmem:[%s1366 + $0x1c8] sm:$0xff]
    %v1425 = vld [vmem:[%s1366 + $0x1d0] sm:$0xff]
    %v1426 = vld [vmem:[%s1366 + $0x1d8] sm:$0xff]
    %v1427 = vld [vmem:[%s1366 + $0x1e0] sm:$0xff]
    %v1428 = vld [vmem:[%s1366 + $0x1e8] sm:$0xff]
    %v1429 = vld [vmem:[%s1366 + $0x1f0] sm:$0xff]
    %v1430 = vld [vmem:[%s1366 + $0x1f8] sm:$0xff]
    %v1495 = vunpack.c.l.b16 %v1367
    %v1496 = vunpack.c.h.b16 %v1367
    %v1497 = vunpack.c.l.b16 %v1368
    %v1498 = vunpack.c.h.b16 %v1368
    %v1499 = vunpack.c.l.b16 %v1369
    %v1500 = vunpack.c.h.b16 %v1369
    %v1501 = vunpack.c.l.b16 %v1370
    %v1502 = vunpack.c.h.b16 %v1370
    %v1503 = vunpack.c.l.b16 %v1371
    %v1504 = vunpack.c.h.b16 %v1371
    %v1505 = vunpack.c.l.b16 %v1372
    %v1506 = vunpack.c.h.b16 %v1372
    %v1507 = vunpack.c.l.b16 %v1373
    %v1508 = vunpack.c.h.b16 %v1373
    %v1509 = vunpack.c.l.b16 %v1374
    %v1510 = vunpack.c.h.b16 %v1374
    %v1511 = vunpack.c.l.b16 %v1375
    %v1512 = vunpack.c.h.b16 %v1375
    %v1513 = vunpack.c.l.b16 %v1376
    %v1514 = vunpack.c.h.b16 %v1376
    %v1515 = vunpack.c.l.b16 %v1377
    %v1516 = vunpack.c.h.b16 %v1377
    %v1517 = vunpack.c.l.b16 %v1378
    %v1518 = vunpack.c.h.b16 %v1378
    %v1519 = vunpack.c.l.b16 %v1379
    %v1520 = vunpack.c.h.b16 %v1379
    %v1521 = vunpack.c.l.b16 %v1380
    %v1522 = vunpack.c.h.b16 %v1380
    %v1523 = vunpack.c.l.b16 %v1381
    %v1524 = vunpack.c.h.b16 %v1381
    %v1525 = vunpack.c.l.b16 %v1382
    %v1526 = vunpack.c.h.b16 %v1382
    %v1527 = vunpack.c.l.b16 %v1383
    %v1528 = vunpack.c.h.b16 %v1383
    %v1529 = vunpack.c.l.b16 %v1384
    %v1530 = vunpack.c.h.b16 %v1384
    %v1531 = vunpack.c.l.b16 %v1385
    %v1532 = vunpack.c.h.b16 %v1385
    %v1533 = vunpack.c.l.b16 %v1386
    %v1534 = vunpack.c.h.b16 %v1386
    %v1535 = vunpack.c.l.b16 %v1387
    %v1536 = vunpack.c.h.b16 %v1387
    %v1537 = vunpack.c.l.b16 %v1388
    %v1538 = vunpack.c.h.b16 %v1388
    %v1539 = vunpack.c.l.b16 %v1389
    %v1540 = vunpack.c.h.b16 %v1389
    %v1541 = vunpack.c.l.b16 %v1390
    %v1542 = vunpack.c.h.b16 %v1390
    %v1543 = vunpack.c.l.b16 %v1391
    %v1544 = vunpack.c.h.b16 %v1391
    %v1545 = vunpack.c.l.b16 %v1392
    %v1546 = vunpack.c.h.b16 %v1392
    %v1547 = vunpack.c.l.b16 %v1393
    %v1548 = vunpack.c.h.b16 %v1393
    %v1549 = vunpack.c.l.b16 %v1394
    %v1550 = vunpack.c.h.b16 %v1394
    %v1551 = vunpack.c.l.b16 %v1395
    %v1552 = vunpack.c.h.b16 %v1395
    %v1553 = vunpack.c.l.b16 %v1396
    %v1554 = vunpack.c.h.b16 %v1396
    %v1555 = vunpack.c.l.b16 %v1397
    %v1556 = vunpack.c.h.b16 %v1397
    %v1557 = vunpack.c.l.b16 %v1398
    %v1558 = vunpack.c.h.b16 %v1398
    %v1559 = vunpack.c.l.b16 %v1399
    %v1560 = vunpack.c.h.b16 %v1399
    %v1561 = vunpack.c.l.b16 %v1400
    %v1562 = vunpack.c.h.b16 %v1400
    %v1563 = vunpack.c.l.b16 %v1401
    %v1564 = vunpack.c.h.b16 %v1401
    %v1565 = vunpack.c.l.b16 %v1402
    %v1566 = vunpack.c.h.b16 %v1402
    %v1567 = vunpack.c.l.b16 %v1403
    %v1568 = vunpack.c.h.b16 %v1403
    %v1569 = vunpack.c.l.b16 %v1404
    %v1570 = vunpack.c.h.b16 %v1404
    %v1571 = vunpack.c.l.b16 %v1405
    %v1572 = vunpack.c.h.b16 %v1405
    %v1573 = vunpack.c.l.b16 %v1406
    %v1574 = vunpack.c.h.b16 %v1406
    %v1575 = vunpack.c.l.b16 %v1407
    %v1576 = vunpack.c.h.b16 %v1407
    %v1577 = vunpack.c.l.b16 %v1408
    %v1578 = vunpack.c.h.b16 %v1408
    %v1579 = vunpack.c.l.b16 %v1409
    %v1580 = vunpack.c.h.b16 %v1409
    %v1581 = vunpack.c.l.b16 %v1410
    %v1582 = vunpack.c.h.b16 %v1410
    %v1583 = vunpack.c.l.b16 %v1411
    %v1584 = vunpack.c.h.b16 %v1411
    %v1585 = vunpack.c.l.b16 %v1412
    %v1586 = vunpack.c.h.b16 %v1412
    %v1587 = vunpack.c.l.b16 %v1413
    %v1588 = vunpack.c.h.b16 %v1413
    %v1589 = vunpack.c.l.b16 %v1414
    %v1590 = vunpack.c.h.b16 %v1414
    %v1591 = vunpack.c.l.b16 %v1415
    %v1592 = vunpack.c.h.b16 %v1415
    %v1593 = vunpack.c.l.b16 %v1416
    %v1594 = vunpack.c.h.b16 %v1416
    %v1595 = vunpack.c.l.b16 %v1417
    %v1596 = vunpack.c.h.b16 %v1417
    %v1597 = vunpack.c.l.b16 %v1418
    %v1598 = vunpack.c.h.b16 %v1418
    %v1599 = vunpack.c.l.b16 %v1419
    %v1600 = vunpack.c.h.b16 %v1419
    %v1601 = vunpack.c.l.b16 %v1420
    %v1602 = vunpack.c.h.b16 %v1420
    %v1603 = vunpack.c.l.b16 %v1421
    %v1604 = vunpack.c.h.b16 %v1421
    %v1605 = vunpack.c.l.b16 %v1422
    %v1606 = vunpack.c.h.b16 %v1422
    %v1607 = vunpack.c.l.b16 %v1423
    %v1608 = vunpack.c.h.b16 %v1423
    %v1609 = vunpack.c.l.b16 %v1424
    %v1610 = vunpack.c.h.b16 %v1424
    %v1611 = vunpack.c.l.b16 %v1425
    %v1612 = vunpack.c.h.b16 %v1425
    %v1613 = vunpack.c.l.b16 %v1426
    %v1614 = vunpack.c.h.b16 %v1426
    %v1615 = vunpack.c.l.b16 %v1427
    %v1616 = vunpack.c.h.b16 %v1427
    %v1617 = vunpack.c.l.b16 %v1428
    %v1618 = vunpack.c.h.b16 %v1428
    %v1619 = vunpack.c.l.b16 %v1429
    %v1620 = vunpack.c.h.b16 %v1429
    %v1621 = vunpack.c.l.b16 %v1430
    %v1622 = vunpack.c.h.b16 %v1430
    %v1623 = vpack.c.b16 %v1499, %v1495
    %v1624 = vpack.c.b16 %v1500, %v1496
    %v1625 = vpack.c.b16 %v1501, %v1497
    %v1626 = vpack.c.b16 %v1502, %v1498
    %v1627 = vpack.c.b16 %v1507, %v1503
    %v1628 = vpack.c.b16 %v1508, %v1504
    %v1629 = vpack.c.b16 %v1509, %v1505
    %v1630 = vpack.c.b16 %v1510, %v1506
    %v1631 = vpack.c.b16 %v1515, %v1511
    %v1632 = vpack.c.b16 %v1516, %v1512
    %v1633 = vpack.c.b16 %v1517, %v1513
    %v1634 = vpack.c.b16 %v1518, %v1514
    %v1635 = vpack.c.b16 %v1523, %v1519
    %v1636 = vpack.c.b16 %v1524, %v1520
    %v1637 = vpack.c.b16 %v1525, %v1521
    %v1638 = vpack.c.b16 %v1526, %v1522
    %v1639 = vpack.c.b16 %v1531, %v1527
    %v1640 = vpack.c.b16 %v1532, %v1528
    %v1641 = vpack.c.b16 %v1533, %v1529
    %v1642 = vpack.c.b16 %v1534, %v1530
    %v1643 = vpack.c.b16 %v1539, %v1535
    %v1644 = vpack.c.b16 %v1540, %v1536
    %v1645 = vpack.c.b16 %v1541, %v1537
    %v1646 = vpack.c.b16 %v1542, %v1538
    %v1647 = vpack.c.b16 %v1547, %v1543
    %v1648 = vpack.c.b16 %v1548, %v1544
    %v1649 = vpack.c.b16 %v1549, %v1545
    %v1650 = vpack.c.b16 %v1550, %v1546
    %v1651 = vpack.c.b16 %v1555, %v1551
    %v1652 = vpack.c.b16 %v1556, %v1552
    %v1653 = vpack.c.b16 %v1557, %v1553
    %v1654 = vpack.c.b16 %v1558, %v1554
    %v1655 = vpack.c.b16 %v1563, %v1559
    %v1656 = vpack.c.b16 %v1564, %v1560
    %v1657 = vpack.c.b16 %v1565, %v1561
    %v1658 = vpack.c.b16 %v1566, %v1562
    %v1659 = vpack.c.b16 %v1571, %v1567
    %v1660 = vpack.c.b16 %v1572, %v1568
    %v1661 = vpack.c.b16 %v1573, %v1569
    %v1662 = vpack.c.b16 %v1574, %v1570
    %v1663 = vpack.c.b16 %v1579, %v1575
    %v1664 = vpack.c.b16 %v1580, %v1576
    %v1665 = vpack.c.b16 %v1581, %v1577
    %v1666 = vpack.c.b16 %v1582, %v1578
    %v1667 = vpack.c.b16 %v1587, %v1583
    %v1668 = vpack.c.b16 %v1588, %v1584
    %v1669 = vpack.c.b16 %v1589, %v1585
    %v1670 = vpack.c.b16 %v1590, %v1586
    %v1671 = vpack.c.b16 %v1595, %v1591
    %v1672 = vpack.c.b16 %v1596, %v1592
    %v1673 = vpack.c.b16 %v1597, %v1593
    %v1674 = vpack.c.b16 %v1598, %v1594
    %v1675 = vpack.c.b16 %v1603, %v1599
    %v1676 = vpack.c.b16 %v1604, %v1600
    %v1677 = vpack.c.b16 %v1605, %v1601
    %v1678 = vpack.c.b16 %v1606, %v1602
    %v1679 = vpack.c.b16 %v1611, %v1607
    %v1680 = vpack.c.b16 %v1612, %v1608
    %v1681 = vpack.c.b16 %v1613, %v1609
    %v1682 = vpack.c.b16 %v1614, %v1610
    %v1683 = vpack.c.b16 %v1619, %v1615
    %v1684 = vpack.c.b16 %v1620, %v1616
    %v1685 = vpack.c.b16 %v1621, %v1617
    %v1686 = vpack.c.b16 %v1622, %v1618
    %1751 = vmatpush.bf16.msra.mxu0 %v1651
    %1752 = vmatpush.bf16.msra.mxu0 %v1647
    %1753 = vmatpush.bf16.msra.mxu0 %v1643
    %1754 = vmatpush.bf16.msra.mxu0 %v1639
    %1755 = vmatpush.bf16.msra.mxu0 %v1635
    %1756 = vmatpush.bf16.msra.mxu0 %v1631
    %1757 = vmatpush.bf16.msra.mxu0 %v1627
    %1758 = vmatpush.bf16.msra.mxu0 %v1623
    %1759 = vmatmul.bf16.gmra.mxu0 %v1364
    %v1760 = vpop.f32.mrf.mxu0
    %v1761 = vadd.f32 %v189, %v1760
    %v1762 = vpop.f32.mrf.mxu0
    %v1763 = vadd.f32 %v189, %v1762
    %1764 = vdwg.mxu0
    %1765 = vmatpush.bf16.msra.mxu0 %v1683
    %1766 = vmatpush.bf16.msra.mxu0 %v1679
    %1767 = vmatpush.bf16.msra.mxu0 %v1675
    %1768 = vmatpush.bf16.msra.mxu0 %v1671
    %1769 = vmatpush.bf16.msra.mxu0 %v1667
    %1770 = vmatpush.bf16.msra.mxu0 %v1663
    %1771 = vmatpush.bf16.msra.mxu0 %v1659
    %1772 = vmatpush.bf16.msra.mxu0 %v1655
    %1773 = vmatmul.bf16.gmra.mxu0 %v1342
    %v1774 = vpop.f32.mrf.mxu0
    %v1775 = vadd.f32 %v1761, %v1774
    %v1776 = vpop.f32.mrf.mxu0
    %v1777 = vadd.f32 %v1763, %v1776
    %1778 = vdwg.mxu0
    %1779 = vmatpush.bf16.msra.mxu0 %v1652
    %1780 = vmatpush.bf16.msra.mxu0 %v1648
    %1781 = vmatpush.bf16.msra.mxu0 %v1644
    %1782 = vmatpush.bf16.msra.mxu0 %v1640
    %1783 = vmatpush.bf16.msra.mxu0 %v1636
    %1784 = vmatpush.bf16.msra.mxu0 %v1632
    %1785 = vmatpush.bf16.msra.mxu0 %v1628
    %1786 = vmatpush.bf16.msra.mxu0 %v1624
    %1787 = vmatmul.bf16.gmra.mxu0 %v1364
    %v1788 = vpop.f32.mrf.mxu0
    %v1789 = vadd.f32 %v190, %v1788
    %v1790 = vpop.f32.mrf.mxu0
    %v1791 = vadd.f32 %v190, %v1790
    %1792 = vdwg.mxu0
    %1793 = vmatpush.bf16.msra.mxu0 %v1684
    %1794 = vmatpush.bf16.msra.mxu0 %v1680
    %1795 = vmatpush.bf16.msra.mxu0 %v1676
    %1796 = vmatpush.bf16.msra.mxu0 %v1672
    %1797 = vmatpush.bf16.msra.mxu0 %v1668
    %1798 = vmatpush.bf16.msra.mxu0 %v1664
    %1799 = vmatpush.bf16.msra.mxu0 %v1660
    %1800 = vmatpush.bf16.msra.mxu0 %v1656
    %1801 = vmatmul.bf16.gmra.mxu0 %v1342
    %v1802 = vpop.f32.mrf.mxu0
    %v1803 = vadd.f32 %v1789, %v1802
    %v1804 = vpop.f32.mrf.mxu0
    %v1805 = vadd.f32 %v1791, %v1804
    %1806 = vdwg.mxu0
    %1807 = vmatpush.bf16.msra.mxu0 %v1653
    %1808 = vmatpush.bf16.msra.mxu0 %v1649
    %1809 = vmatpush.bf16.msra.mxu0 %v1645
    %1810 = vmatpush.bf16.msra.mxu0 %v1641
    %1811 = vmatpush.bf16.msra.mxu0 %v1637
    %1812 = vmatpush.bf16.msra.mxu0 %v1633
    %1813 = vmatpush.bf16.msra.mxu0 %v1629
    %1814 = vmatpush.bf16.msra.mxu0 %v1625
    %1815 = vmatmul.bf16.gmra.mxu0 %v1364
    %v1816 = vpop.f32.mrf.mxu0
    %v1817 = vadd.f32 %v191, %v1816
    %v1818 = vpop.f32.mrf.mxu0
    %v1819 = vadd.f32 %v191, %v1818
    %1820 = vdwg.mxu0
    %1821 = vmatpush.bf16.msra.mxu0 %v1685
    %1822 = vmatpush.bf16.msra.mxu0 %v1681
    %1823 = vmatpush.bf16.msra.mxu0 %v1677
    %1824 = vmatpush.bf16.msra.mxu0 %v1673
    %1825 = vmatpush.bf16.msra.mxu0 %v1669
    %1826 = vmatpush.bf16.msra.mxu0 %v1665
    %1827 = vmatpush.bf16.msra.mxu0 %v1661
    %1828 = vmatpush.bf16.msra.mxu0 %v1657
    %1829 = vmatmul.bf16.gmra.mxu0 %v1342
    %v1830 = vpop.f32.mrf.mxu0
    %v1831 = vadd.f32 %v1817, %v1830
    %v1832 = vpop.f32.mrf.mxu0
    %v1833 = vadd.f32 %v1819, %v1832
    %1834 = vdwg.mxu0
    %1835 = vmatpush.bf16.msra.mxu0 %v1654
    %1836 = vmatpush.bf16.msra.mxu0 %v1650
    %1837 = vmatpush.bf16.msra.mxu0 %v1646
    %1838 = vmatpush.bf16.msra.mxu0 %v1642
    %1839 = vmatpush.bf16.msra.mxu0 %v1638
    %1840 = vmatpush.bf16.msra.mxu0 %v1634
    %1841 = vmatpush.bf16.msra.mxu0 %v1630
    %1842 = vmatpush.bf16.msra.mxu0 %v1626
    %1843 = vmatmul.bf16.gmra.mxu0 %v1364
    %v1844 = vpop.f32.mrf.mxu0
    %v1845 = vadd.f32 %v192, %v1844
    %v1846 = vpop.f32.mrf.mxu0
    %v1847 = vadd.f32 %v192, %v1846
    %1848 = vdwg.mxu0
    %1849 = vmatpush.bf16.msra.mxu0 %v1686
    %1850 = vmatpush.bf16.msra.mxu0 %v1682
    %1851 = vmatpush.bf16.msra.mxu0 %v1678
    %1852 = vmatpush.bf16.msra.mxu0 %v1674
    %1853 = vmatpush.bf16.msra.mxu0 %v1670
    %1854 = vmatpush.bf16.msra.mxu0 %v1666
    %1855 = vmatpush.bf16.msra.mxu0 %v1662
    %1856 = vmatpush.bf16.msra.mxu0 %v1658
    %1857 = vmatmul.bf16.gmra.mxu0 %v1342
    %v1858 = vpop.f32.mrf.mxu0
    %v1859 = vadd.f32 %v1845, %v1858
    %v1860 = vpop.f32.mrf.mxu0
    %v1861 = vadd.f32 %v1847, %v1860
    %1862 = vdwg.mxu0
    %v1863 = vxor.u32 %v1775, 2147483648
    %v1864 = vxor.u32 %v1777, 2147483648
    %v1865 = vmul.f32 %v1863, 1.442695
    %v1866 = vpow.pop %v1865
    %v1867 = vmul.f32 %v1864, 1.442695
    %v1868 = vpow.pop %v1867
    %v1869 = vadd.f32 %v1866, 1.0
    %v1870 = vadd.f32 %v1868, 1.0
    %v1871 = vrcp.pop %v1869
    %v1872 = vmul.f32 %v1869, %v1871
    %v1873 = vsub.f32 1.0, %v1872
    %v1874 = vmul.f32 %v1871, %v1873
    %v1875 = vadd.f32 %v1871, %v1874
    %vm1876 = vweird.f32 %v1869
    %vm1877 = vweird.f32 %v1871
    %vm1878 = vmor %vm1876, %vm1877
    %v1879 = vsel %vm1878, %v1871, %v1875
    %v1880 = vand.u32 2147483647, %v1869
    %vm1881 = vcmp.eq.f32.partialorder %v1880, 8.507059e+37
    %v1882 = vand.u32 %v1869, 2147483648
    %v1883 = vor.u32 1.1754944e-38, %v1882
    %v1884 = vsel %vm1881, %v1883, %v1879
    %v1885 = vmul.f32 1.0, %v1884
    %v1886 = vrcp.pop %v1870
    %v1887 = vmul.f32 %v1870, %v1886
    %v1888 = vsub.f32 1.0, %v1887
    %v1889 = vmul.f32 %v1886, %v1888
    %v1890 = vadd.f32 %v1886, %v1889
    %vm1891 = vweird.f32 %v1870
    %vm1892 = vweird.f32 %v1886
    %vm1893 = vmor %vm1891, %vm1892
    %v1894 = vsel %vm1893, %v1886, %v1890
    %v1895 = vand.u32 2147483647, %v1870
    %vm1896 = vcmp.eq.f32.partialorder %v1895, 8.507059e+37
    %v1897 = vand.u32 %v1870, 2147483648
    %v1898 = vor.u32 1.1754944e-38, %v1897
    %v1899 = vsel %vm1896, %v1898, %v1894
    %v1900 = vmul.f32 1.0, %v1899
    %v1901 = vxor.u32 %v1803, 2147483648
    %v1902 = vxor.u32 %v1805, 2147483648
    %v1903 = vmul.f32 %v1901, 1.442695
    %v1904 = vpow.pop %v1903
    %v1905 = vmul.f32 %v1902, 1.442695
    %v1906 = vpow.pop %v1905
    %v1907 = vadd.f32 %v1904, 1.0
    %v1908 = vadd.f32 %v1906, 1.0
    %v1909 = vrcp.pop %v1907
    %v1910 = vmul.f32 %v1907, %v1909
    %v1911 = vsub.f32 1.0, %v1910
    %v1912 = vmul.f32 %v1909, %v1911
    %v1913 = vadd.f32 %v1909, %v1912
    %vm1914 = vweird.f32 %v1907
    %vm1915 = vweird.f32 %v1909
    %vm1916 = vmor %vm1914, %vm1915
    %v1917 = vsel %vm1916, %v1909, %v1913
    %v1918 = vand.u32 2147483647, %v1907
    %vm1919 = vcmp.eq.f32.partialorder %v1918, 8.507059e+37
    %v1920 = vand.u32 %v1907, 2147483648
    %v1921 = vor.u32 1.1754944e-38, %v1920
    %v1922 = vsel %vm1919, %v1921, %v1917
    %v1923 = vmul.f32 1.0, %v1922
    %v1924 = vrcp.pop %v1908
    %v1925 = vmul.f32 %v1908, %v1924
    %v1926 = vsub.f32 1.0, %v1925
    %v1927 = vmul.f32 %v1924, %v1926
    %v1928 = vadd.f32 %v1924, %v1927
    %vm1929 = vweird.f32 %v1908
    %vm1930 = vweird.f32 %v1924
    %vm1931 = vmor %vm1929, %vm1930
    %v1932 = vsel %vm1931, %v1924, %v1928
    %v1933 = vand.u32 2147483647, %v1908
    %vm1934 = vcmp.eq.f32.partialorder %v1933, 8.507059e+37
    %v1935 = vand.u32 %v1908, 2147483648
    %v1936 = vor.u32 1.1754944e-38, %v1935
    %v1937 = vsel %vm1934, %v1936, %v1932
    %v1938 = vmul.f32 1.0, %v1937
    %v1939 = vmul.f32 %v1885, %v1859
    %v1940 = vmul.f32 %v1900, %v1861
    %v1941 = vadd.f32 %v1831, %v1939
    %v1942 = vadd.f32 %v1833, %v1940
    %v1943 = vtanh.pop %v1941
    %v1944 = vtanh.pop %v1942
    %v1945 = vsub.f32 1.0, %v1923
    %v1946 = vsub.f32 1.0, %v1938
    %v1947 = vmul.f32 %v1945, %v1943
    %v1948 = vmul.f32 %v1946, %v1944
    %v1949 = vmul.f32 %v1923, %v1334
    %v1950 = vmul.f32 %v1938, %v1335
    %v1951 = vadd.f32 %v1947, %v1949
    %v1952 = vadd.f32 %v1948, %v1950
    %1953 = vst [vmem:[#allocation10] sm:$0xff] %v1951
    %1954 = vst [vmem:[#allocation10 + $0x8] sm:$0xff] %v1952
    // Predicated region
    $region34: #{tpu_custom_call.1} parent=1 // pred_check
      _
    $region35: #{tpu_custom_call.1} parent=1 // pred_check_branch
      %1956 = sbr.rel (0) target = $region37
    $region36: #{tpu_custom_call.1} parent=1 // pred_region
      %1958 = vsyncadd [#allocation4], 0
      %s1959 = sshll.u32 [#allocation10], 4
      %s1960 = int_to_ptr.vmem [resolvable:$true] %s1959
      %s1961 = sshll.u32 %s4, 4
      %s1962 = int_to_ptr.hbm [resolvable:$true] %s1961
      %1967 = dma.vmem_to_hbm [thread:$0]  %s1960, 256, %s1962, [#allocation4], 128, 128, 8
    $region37: #{tpu_custom_call.1} parent=1 // pred_fallthru
      _
    // Predicated region
    $region38: #{tpu_custom_call.1} parent=1 // pred_check
      _
    $region39: #{tpu_custom_call.1} parent=1 // pred_check_branch
      %1969 = sbr.rel (0) target = $region41
    $region40: #{tpu_custom_call.1} parent=1 // pred_region
      %1971 = dma.done [#allocation4], 256
    $region41: #{tpu_custom_call.1} parent=1 // pred_fallthru
      _
    %1972 = vsyncpa [#allocation3], 1
    %1973 = vsyncpa [#allocation6], 1
    %1974 = vsyncpa [#allocation9], 1
    %1975 = vsyncpa [#allocation4], 1

</llo_original>
